<compile_context>
chip_gen: v5e
topology: v5e:2x2
jax: 0.10.0
libtpu: 0.0.40
codegen_flags: <defaults>
</compile_context>

<pallas_src>
import functools
import math

import jax
import jax.numpy as jnp
from jax import lax
from jax.experimental import pallas as pl
from jax.experimental.pallas import tpu as pltpu

NEG_INF = -1e30  # finite stand-in for masked_fill(-inf); avoids NaN on fully-masked rows


def _layernorm(x, gamma, beta, eps=1e-5):
    mu = jnp.mean(x, axis=-1, keepdims=True)
    var = jnp.mean((x - mu) ** 2, axis=-1, keepdims=True)
    return (x - mu) * lax.rsqrt(var + eps) * gamma + beta


def encoder_layer_kernel(num_heads, head_dim, matmul_dtype,
                         x_ref, mask_ref,
                         wq_ref, bq_ref, wk_ref, bk_ref, wv_ref, bv_ref,
                         wo_ref, bo_ref, g1_ref, be1_ref,
                         w1_ref, sel_ref, b1x_ref, w2_ref, b2_ref,
                         g2_ref, be2_ref,
                         o_ref):
    """One grid step == one batch element; everything stays resident in VMEM."""
    H, D = num_heads, head_dim
    x = x_ref[0]                                     # (S, E) f32
    S, E = x.shape

    def mm(spec, a, b):
        # MXU contraction; matmul_dtype=bfloat16 on v6e/v7x, accumulation always f32.
        return jnp.einsum(spec, a.astype(matmul_dtype), b.astype(matmul_dtype),
                          preferred_element_type=jnp.float32)

    # Additive attention mask, computed once (hoisted out of all per-head math).
    m_add = jnp.where(mask_ref[0] != 0, NEG_INF, 0.0).astype(jnp.float32)      # (S, S)

    # ---- Multi-head attention, batched over heads (leading `h` everywhere). ----
    xh = jnp.broadcast_to(x[None, :, :], (H, S, E))                            # (H, S, E)
    qh = mm('hse,hed->hsd', xh, wq_ref[...]) + bq_ref[...]                     # (H, S, D)
    kh = mm('hse,hed->hsd', xh, wk_ref[...]) + bk_ref[...]
    vh = mm('hse,hed->hsd', xh, wv_ref[...]) + bv_ref[...]

    scale = 1.0 / math.sqrt(D)
    s = mm('hqd,hkd->hqk', qh, kh) * scale + m_add[None, :, :]                 # (H, S, S)
    s_max = jnp.max(s, axis=-1, keepdims=True)
    p = jnp.exp(s - s_max)
    p = p * pl.reciprocal(jnp.sum(p, axis=-1, keepdims=True), approx=True)
    # TODO(synk): dropout on attention probs / activations is a no-op (eval mode).
    ctx = mm('hqk,hkd->hqd', p, vh)                                            # (H, S, D)

    # concat-of-heads + output Linear == sum over heads of per-head projections
    # (head-batched contraction + leading-axis sum; avoids any (H,S,D)->(S,E) relayout).
    attn = jnp.sum(mm('hsd,hde->hse', ctx, wo_ref[...]), axis=0) + bo_ref[0]   # (S, E)

    y1 = _layernorm(x + attn, g1_ref[0], be1_ref[0])                           # (S, E)

    # ---- Per-position FFN as two lane-dense 2D matmuls. ------------------------
    # w1_ref is (E, S*F) with position-s weights in lane block s; sel/b1x keep only the
    # diagonal (own-position) block of the (S, S*F) intermediate and add layer-1 bias.
    r = jnp.dot(y1.astype(matmul_dtype), w1_ref[...].astype(matmul_dtype),
                preferred_element_type=jnp.float32)                            # (S, S*F)
    hidden = r * sel_ref[...] + b1x_ref[...]                                   # (S, S*F)
    ffn = jnp.dot(hidden.astype(matmul_dtype), w2_ref[...].astype(matmul_dtype),
                  preferred_element_type=jnp.float32) + b2_ref[...]            # (S, E)
    # (No nonlinearity between the two per-position Linears, exactly as in PyTorch.)

    o_ref[0] = _layernorm(y1 + ffn, g2_ref[0], be2_ref[0])


def encoder_layer(x, mask_i32, params, num_heads, matmul_dtype=jnp.float32):
    B, S, E = x.shape
    H = num_heads
    D = E // H
    (wq, bq, wk, bk, wv, bv, wo, bo, g1, be1, w1, b1, w2, b2, g2, be2) = params
    F = w1.shape[-1]

    # ---- One-time weight re-layouts (plain XLA, outside the kernel). ----
    def heads_w(w):   # (E, E) -> (H, E, D): head h owns output columns [h*D, (h+1)*D)
        return jnp.transpose(w.reshape(E, H, D), (1, 0, 2))

    def heads_b(b):   # (1, E) -> (H, 1, D)
        return b.reshape(H, 1, D)

    wq_h, wk_h, wv_h = heads_w(wq), heads_w(wk), heads_w(wv)
    bq_h, bk_h, bv_h = heads_b(bq), heads_b(bk), heads_b(bv)
    wo_h = wo.reshape(H, D, E)                                       # (H, D, E)

    # Per-position FFN weights flattened into lane-dense 2D operands; `sel` is the
    # block-diagonal selector for the (S, S*F) intermediate, `b1x` carries the layer-1
    # bias inside that diagonal block.
    w1_all = jnp.transpose(w1, (1, 0, 2)).reshape(E, S * F)          # (E, S*F)
    w2_all = w2.reshape(S * F, E)                                    # (S*F, E)
    sel = (jnp.arange(S)[:, None] == (jnp.arange(S * F) // F)[None, :]
           ).astype(jnp.float32)                                     # (S, S*F)
    b1x = sel * jnp.tile(b1, (1, S))                                 # (S, S*F)

    kparams = [wq_h, bq_h, wk_h, bk_h, wv_h, bv_h, wo_h, bo,
               g1, be1, w1_all, sel, b1x, w2_all, b2, g2, be2]

    # TODO(synk): at production sizes, single-buffer these constant weight blocks
    # (pipeline_mode=pl.Buffered(1)) and tile w1_all/w2_all over S to respect v7x's
    # 64 MiB VMEM; at these toy shapes the default double-buffering fits easily.
    def full_spec(shape):
        n = len(shape)
        return pl.BlockSpec(shape, lambda b, _n=n: (0,) * _n)

    in_specs = [
        pl.BlockSpec((1, S, E), lambda b: (b, 0, 0)),   # seq
        pl.BlockSpec((1, S, S), lambda b: (b, 0, 0)),   # mask
    ] + [full_spec(tuple(p.shape)) for p in kparams]

    kernel = functools.partial(encoder_layer_kernel, H, D, matmul_dtype)

    return pl.pallas_call(
        kernel,
        out_shape=jax.ShapeDtypeStruct((B, S, E), jnp.float32),
        grid=(B,),   # one batch element per step; >=2 parallel steps keeps both v7x TCs busy
        in_specs=in_specs,
        out_specs=pl.BlockSpec((1, S, E), lambda b: (b, 0, 0)),
        compiler_params=pltpu.CompilerParams(dimension_semantics=("parallel",)),
    )(x, mask_i32, *kparams)


def encoder_layer_ref(x, mask_bool, params, num_heads):
    """Pure-JAX reference of the same math (for correctness checking)."""
    (wq, bq, wk, bk, wv, bv, wo, bo, g1, be1, w1, b1, w2, b2, g2, be2) = params
    B, S, E = x.shape
    D = E // num_heads
    q = x @ wq + bq[0]
    k = x @ wk + bk[0]
    v = x @ wv + bv[0]
    outs = []
    for h in range(num_heads):
        sl = slice(h * D, (h + 1) * D)
        s = jnp.einsum('bqd,bkd->bqk', q[..., sl], k[..., sl]) / math.sqrt(D)
        s = jnp.where(mask_bool, -jnp.inf, s)
        p = jax.nn.softmax(s, axis=-1)
        outs.append(jnp.einsum('bqk,bkd->bqd', p, v[..., sl]))
    attn = jnp.concatenate(outs, axis=-1) @ wo + bo[0]
    y1 = _layernorm(x + attn, g1[0], be1[0])
    hidden = jnp.einsum('bse,sef->bsf', y1, w1) + b1
    ffn = jnp.einsum('bsf,sfe->bse', hidden, w2) + b2
    return _layernorm(y1 + ffn, g2[0], be2[0])


if __name__ == "__main__":
    # Small shapes consistent with the module: embedding_dim=32, num_heads=4,
    # FFN_dim=64, max_seq_len=8, batch=2.
    B, S, E, H, F = 2, 8, 32, 4, 64

    key = jax.random.PRNGKey(0)
    ks = jax.random.split(key, 18)

    def nrm(k, shape, scale=0.1):
        return (scale * jax.random.normal(k, shape)).astype(jnp.float32)

    params = [
        nrm(ks[0], (E, E)), nrm(ks[1], (1, E)),          # Wq (heads concatenated), bq
        nrm(ks[2], (E, E)), nrm(ks[3], (1, E)),          # Wk, bk
        nrm(ks[4], (E, E)), nrm(ks[5], (1, E)),          # Wv, bv
        nrm(ks[6], (E, E)), nrm(ks[7], (1, E)),          # output Linear
        1.0 + nrm(ks[8], (1, E)), nrm(ks[9], (1, E)),    # LayerNorm 1 gamma/beta
        nrm(ks[10], (S, E, F)), nrm(ks[11], (S, F)),     # per-position FFN layer1
        nrm(ks[12], (S, F, E)), nrm(ks[13], (S, E)),     # per-position FFN layer2
        1.0 + nrm(ks[14], (1, E)), nrm(ks[15], (1, E)),  # LayerNorm 2 gamma/beta
    ]

    x = jax.random.normal(ks[16], (B, S, E), jnp.float32)

    # Padding-style key mask: batch 0 attends to all 8 keys, batch 1 masks the
    # last 2 key positions (never fully masks a row).
    lens = jnp.array([8, 6])
    key_pos = jnp.arange(S)
    mask_bool = jnp.broadcast_to(key_pos[None, None, :] >= lens[:, None, None], (B, S, S))
    mask_i32 = mask_bool.astype(jnp.int32)

    # Default matmul_dtype=float32 matches the PyTorch module exactly; pass
    # matmul_dtype=jnp.bfloat16 on v6e/v7x for full-rate MXU (f32 accumulation).
    out = encoder_layer(x, mask_i32, params, H)
    out = jax.block_until_ready(out)

    ref = encoder_layer_ref(x, mask_bool, params, H)
    assert out.shape == (B, S, E)
    # Tolerance covers the approx (EUP) reciprocal in the kernel softmax.
    assert jnp.allclose(out, ref, atol=2e-3, rtol=2e-3), "mismatch vs JAX reference"

    print("KERNEL_OK")
</pallas_src>

<mosaic_0001>
module attributes {stable_mosaic.version = 11 : i64} {
  func.func @encoder_layer_kernel(%arg0: i32, %arg1: memref<1x8x32xf32, #tpu.memory_space<vmem>>, %arg2: memref<1x8x8xi32, #tpu.memory_space<vmem>>, %arg3: memref<4x32x8xf32, #tpu.memory_space<vmem>>, %arg4: memref<4x1x8xf32, #tpu.memory_space<vmem>>, %arg5: memref<4x32x8xf32, #tpu.memory_space<vmem>>, %arg6: memref<4x1x8xf32, #tpu.memory_space<vmem>>, %arg7: memref<4x32x8xf32, #tpu.memory_space<vmem>>, %arg8: memref<4x1x8xf32, #tpu.memory_space<vmem>>, %arg9: memref<4x8x32xf32, #tpu.memory_space<vmem>>, %arg10: memref<1x32xf32, #tpu.memory_space<vmem>>, %arg11: memref<1x32xf32, #tpu.memory_space<vmem>>, %arg12: memref<1x32xf32, #tpu.memory_space<vmem>>, %arg13: memref<32x512xf32, #tpu.memory_space<vmem>>, %arg14: memref<8x512xf32, #tpu.memory_space<vmem>>, %arg15: memref<8x512xf32, #tpu.memory_space<vmem>>, %arg16: memref<512x32xf32, #tpu.memory_space<vmem>>, %arg17: memref<8x32xf32, #tpu.memory_space<vmem>>, %arg18: memref<1x32xf32, #tpu.memory_space<vmem>>, %arg19: memref<1x32xf32, #tpu.memory_space<vmem>>, %arg20: memref<1x8x32xf32, #tpu.memory_space<vmem>>) attributes {dimension_semantics = [#tpu.dimension_semantics<parallel>], iteration_bounds = array<i64: 2>, scalar_prefetch = 0 : i64, scratch_operands = 0 : i64, tpu.core_type = #tpu.core_type<tc>, window_params = [{transform_indices = @transform_0, window_bounds = array<i64: 1, 8, 32>}, {transform_indices = @transform_1, window_bounds = array<i64: 1, 8, 8>}, {pipeline_mode = #tpu.pipeline_mode<synchronous>, transform_indices = @transform_2, window_bounds = array<i64: 4, 32, 8>}, {pipeline_mode = #tpu.pipeline_mode<synchronous>, transform_indices = @transform_3, window_bounds = array<i64: 4, 1, 8>}, {pipeline_mode = #tpu.pipeline_mode<synchronous>, transform_indices = @transform_4, window_bounds = array<i64: 4, 32, 8>}, {pipeline_mode = #tpu.pipeline_mode<synchronous>, transform_indices = @transform_5, window_bounds = array<i64: 4, 1, 8>}, {pipeline_mode = #tpu.pipeline_mode<synchronous>, transform_indices = @transform_6, window_bounds = array<i64: 4, 32, 8>}, {pipeline_mode = #tpu.pipeline_mode<synchronous>, transform_indices = @transform_7, window_bounds = array<i64: 4, 1, 8>}, {pipeline_mode = #tpu.pipeline_mode<synchronous>, transform_indices = @transform_8, window_bounds = array<i64: 4, 8, 32>}, {pipeline_mode = #tpu.pipeline_mode<synchronous>, transform_indices = @transform_9, window_bounds = array<i64: 1, 32>}, {pipeline_mode = #tpu.pipeline_mode<synchronous>, transform_indices = @transform_10, window_bounds = array<i64: 1, 32>}, {pipeline_mode = #tpu.pipeline_mode<synchronous>, transform_indices = @transform_11, window_bounds = array<i64: 1, 32>}, {pipeline_mode = #tpu.pipeline_mode<synchronous>, transform_indices = @transform_12, window_bounds = array<i64: 32, 512>}, {pipeline_mode = #tpu.pipeline_mode<synchronous>, transform_indices = @transform_13, window_bounds = array<i64: 8, 512>}, {pipeline_mode = #tpu.pipeline_mode<synchronous>, transform_indices = @transform_14, window_bounds = array<i64: 8, 512>}, {pipeline_mode = #tpu.pipeline_mode<synchronous>, transform_indices = @transform_15, window_bounds = array<i64: 512, 32>}, {pipeline_mode = #tpu.pipeline_mode<synchronous>, transform_indices = @transform_16, window_bounds = array<i64: 8, 32>}, {pipeline_mode = #tpu.pipeline_mode<synchronous>, transform_indices = @transform_17, window_bounds = array<i64: 1, 32>}, {pipeline_mode = #tpu.pipeline_mode<synchronous>, transform_indices = @transform_18, window_bounds = array<i64: 1, 32>}, {transform_indices = @transform_19, window_bounds = array<i64: 1, 8, 32>}]} {
    %c0 = arith.constant 0 : index
    %c0_0 = arith.constant 0 : index
    %c0_1 = arith.constant 0 : index
    %0 = vector.load %arg1[%c0, %c0_0, %c0_1] : memref<1x8x32xf32, #tpu.memory_space<vmem>>, vector<1x8x32xf32>
    %1 = vector.shape_cast %0 : vector<1x8x32xf32> to vector<8x32xf32>
    %c0_2 = arith.constant 0 : index
    %c0_3 = arith.constant 0 : index
    %c0_4 = arith.constant 0 : index
    %2 = vector.load %arg2[%c0_2, %c0_3, %c0_4] : memref<1x8x8xi32, #tpu.memory_space<vmem>>, vector<1x8x8xi32>
    %3 = vector.shape_cast %2 : vector<1x8x8xi32> to vector<8x8xi32>
    %c0_i32 = arith.constant 0 : i32
    %4 = vector.broadcast %c0_i32 : i32 to vector<8x8xi32>
    %5 = arith.cmpi ne, %3, %4 : vector<8x8xi32>
    %cst = arith.constant -1.000000e+30 : f32
    %cst_5 = arith.constant 0.000000e+00 : f32
    %6 = vector.broadcast %cst : f32 to vector<8x8xf32>
    %7 = vector.broadcast %cst_5 : f32 to vector<8x8xf32>
    %8 = arith.select %5, %6, %7 : vector<8x8xi1>, vector<8x8xf32>
    %9 = vector.shape_cast %1 : vector<8x32xf32> to vector<1x8x32xf32>
    %10 = vector.shape_cast %9 : vector<1x8x32xf32> to vector<1x8x32xf32>
    %11 = vector.broadcast %10 : vector<1x8x32xf32> to vector<4x8x32xf32>
    %c0_6 = arith.constant 0 : index
    %c0_7 = arith.constant 0 : index
    %c0_8 = arith.constant 0 : index
    %12 = vector.load %arg3[%c0_6, %c0_7, %c0_8] : memref<4x32x8xf32, #tpu.memory_space<vmem>>, vector<4x32x8xf32>
    "tpu.trace_start"() <{level = 10 : i32, message = "hse,hed->hsd"}> : () -> ()
    %cst_9 = arith.constant dense<0.000000e+00> : vector<4x8x8xf32>
    %13 = tpu.matmul %11, %12, %cst_9 {dimension_numbers = #tpu.dot_dimension_numbers<[2], [1], [1], [2], [0, 0, 0, 1, 1, 2], [0], [0]>} : vector<4x8x32xf32>, vector<4x32x8xf32>, vector<4x8x8xf32> -> vector<4x8x8xf32>
    "tpu.trace_stop"() : () -> ()
    %c0_10 = arith.constant 0 : index
    %c0_11 = arith.constant 0 : index
    %c0_12 = arith.constant 0 : index
    %14 = vector.load %arg4[%c0_10, %c0_11, %c0_12] : memref<4x1x8xf32, #tpu.memory_space<vmem>>, vector<4x1x8xf32>
    %15 = vector.broadcast %14 : vector<4x1x8xf32> to vector<4x8x8xf32>
    %16 = arith.addf %13, %15 : vector<4x8x8xf32>
    %c0_13 = arith.constant 0 : index
    %c0_14 = arith.constant 0 : index
    %c0_15 = arith.constant 0 : index
    %17 = vector.load %arg5[%c0_13, %c0_14, %c0_15] : memref<4x32x8xf32, #tpu.memory_space<vmem>>, vector<4x32x8xf32>
    "tpu.trace_start"() <{level = 10 : i32, message = "hse,hed->hsd"}> : () -> ()
    %cst_16 = arith.constant dense<0.000000e+00> : vector<4x8x8xf32>
    %18 = tpu.matmul %11, %17, %cst_16 {dimension_numbers = #tpu.dot_dimension_numbers<[2], [1], [1], [2], [0, 0, 0, 1, 1, 2], [0], [0]>} : vector<4x8x32xf32>, vector<4x32x8xf32>, vector<4x8x8xf32> -> vector<4x8x8xf32>
    "tpu.trace_stop"() : () -> ()
    %c0_17 = arith.constant 0 : index
    %c0_18 = arith.constant 0 : index
    %c0_19 = arith.constant 0 : index
    %19 = vector.load %arg6[%c0_17, %c0_18, %c0_19] : memref<4x1x8xf32, #tpu.memory_space<vmem>>, vector<4x1x8xf32>
    %20 = vector.broadcast %19 : vector<4x1x8xf32> to vector<4x8x8xf32>
    %21 = arith.addf %18, %20 : vector<4x8x8xf32>
    %c0_20 = arith.constant 0 : index
    %c0_21 = arith.constant 0 : index
    %c0_22 = arith.constant 0 : index
    %22 = vector.load %arg7[%c0_20, %c0_21, %c0_22] : memref<4x32x8xf32, #tpu.memory_space<vmem>>, vector<4x32x8xf32>
    "tpu.trace_start"() <{level = 10 : i32, message = "hse,hed->hsd"}> : () -> ()
    %cst_23 = arith.constant dense<0.000000e+00> : vector<4x8x8xf32>
    %23 = tpu.matmul %11, %22, %cst_23 {dimension_numbers = #tpu.dot_dimension_numbers<[2], [1], [1], [2], [0, 0, 0, 1, 1, 2], [0], [0]>} : vector<4x8x32xf32>, vector<4x32x8xf32>, vector<4x8x8xf32> -> vector<4x8x8xf32>
    "tpu.trace_stop"() : () -> ()
    %c0_24 = arith.constant 0 : index
    %c0_25 = arith.constant 0 : index
    %c0_26 = arith.constant 0 : index
    %24 = vector.load %arg8[%c0_24, %c0_25, %c0_26] : memref<4x1x8xf32, #tpu.memory_space<vmem>>, vector<4x1x8xf32>
    %25 = vector.broadcast %24 : vector<4x1x8xf32> to vector<4x8x8xf32>
    %26 = arith.addf %23, %25 : vector<4x8x8xf32>
    "tpu.trace_start"() <{level = 10 : i32, message = "hqd,hkd->hqk"}> : () -> ()
    %cst_27 = arith.constant dense<0.000000e+00> : vector<4x8x8xf32>
    %27 = tpu.matmul %16, %21, %cst_27 {dimension_numbers = #tpu.dot_dimension_numbers<[2], [2], [1], [1], [0, 0, 0, 1, 1, 1], [0], [0]>} : vector<4x8x8xf32>, vector<4x8x8xf32>, vector<4x8x8xf32> -> vector<4x8x8xf32>
    "tpu.trace_stop"() : () -> ()
    %cst_28 = arith.constant 0.353553385 : f32
    %28 = vector.broadcast %cst_28 : f32 to vector<4x8x8xf32>
    %29 = arith.mulf %27, %28 : vector<4x8x8xf32>
    %30 = vector.shape_cast %8 : vector<8x8xf32> to vector<1x8x8xf32>
    %31 = vector.broadcast %30 : vector<1x8x8xf32> to vector<4x8x8xf32>
    %32 = arith.addf %29, %31 : vector<4x8x8xf32>
    %cst_29 = arith.constant dense<0xFF800000> : vector<4x8xf32>
    %33 = vector.multi_reduction <maximumf>, %32, %cst_29 [2] : vector<4x8x8xf32> to vector<4x8xf32>
    %34 = vector.shape_cast %33 : vector<4x8xf32> to vector<4x8x1xf32>
    %35 = vector.broadcast %34 : vector<4x8x1xf32> to vector<4x8x8xf32>
    %36 = arith.subf %32, %35 : vector<4x8x8xf32>
    %37 = math.exp %36 : vector<4x8x8xf32>
    %cst_30 = arith.constant dense<0.000000e+00> : vector<4x8xf32>
    %38 = vector.multi_reduction <add>, %37, %cst_30 [2] : vector<4x8x8xf32> to vector<4x8xf32>
    %39 = vector.shape_cast %38 : vector<4x8xf32> to vector<4x8x1xf32>
    %40 = tpu.reciprocal %39 {approx = true} : vector<4x8x1xf32> -> vector<4x8x1xf32>
    %41 = vector.broadcast %40 : vector<4x8x1xf32> to vector<4x8x8xf32>
    %42 = arith.mulf %37, %41 : vector<4x8x8xf32>
    "tpu.trace_start"() <{level = 10 : i32, message = "hqk,hkd->hqd"}> : () -> ()
    %cst_31 = arith.constant dense<0.000000e+00> : vector<4x8x8xf32>
    %43 = tpu.matmul %42, %26, %cst_31 {dimension_numbers = #tpu.dot_dimension_numbers<[2], [1], [1], [2], [0, 0, 0, 1, 1, 2], [0], [0]>} : vector<4x8x8xf32>, vector<4x8x8xf32>, vector<4x8x8xf32> -> vector<4x8x8xf32>
    "tpu.trace_stop"() : () -> ()
    %c0_32 = arith.constant 0 : index
    %c0_33 = arith.constant 0 : index
    %c0_34 = arith.constant 0 : index
    %44 = vector.load %arg9[%c0_32, %c0_33, %c0_34] : memref<4x8x32xf32, #tpu.memory_space<vmem>>, vector<4x8x32xf32>
    "tpu.trace_start"() <{level = 10 : i32, message = "hsd,hde->hse"}> : () -> ()
    %cst_35 = arith.constant dense<0.000000e+00> : vector<4x8x32xf32>
    %45 = tpu.matmul %43, %44, %cst_35 {dimension_numbers = #tpu.dot_dimension_numbers<[2], [1], [1], [2], [0, 0, 0, 1, 1, 2], [0], [0]>} : vector<4x8x8xf32>, vector<4x8x32xf32>, vector<4x8x32xf32> -> vector<4x8x32xf32>
    "tpu.trace_stop"() : () -> ()
    %cst_36 = arith.constant dense<0.000000e+00> : vector<8x32xf32>
    %46 = vector.multi_reduction <add>, %45, %cst_36 [0] : vector<4x8x32xf32> to vector<8x32xf32>
    %c0_37 = arith.constant 0 : index
    %c0_38 = arith.constant 0 : index
    %47 = vector.load %arg10[%c0_37, %c0_38] : memref<1x32xf32, #tpu.memory_space<vmem>>, vector<1x32xf32>
    %48 = vector.shape_cast %47 : vector<1x32xf32> to vector<32xf32>
    %49 = vector.shape_cast %48 : vector<32xf32> to vector<1x32xf32>
    %50 = vector.broadcast %49 : vector<1x32xf32> to vector<8x32xf32>
    %51 = arith.addf %46, %50 : vector<8x32xf32>
    %52 = arith.addf %1, %51 : vector<8x32xf32>
    %c0_39 = arith.constant 0 : index
    %c0_40 = arith.constant 0 : index
    %53 = vector.load %arg11[%c0_39, %c0_40] : memref<1x32xf32, #tpu.memory_space<vmem>>, vector<1x32xf32>
    %54 = vector.shape_cast %53 : vector<1x32xf32> to vector<32xf32>
    %c0_41 = arith.constant 0 : index
    %c0_42 = arith.constant 0 : index
    %55 = vector.load %arg12[%c0_41, %c0_42] : memref<1x32xf32, #tpu.memory_space<vmem>>, vector<1x32xf32>
    %56 = vector.shape_cast %55 : vector<1x32xf32> to vector<32xf32>
    %cst_43 = arith.constant dense<0.000000e+00> : vector<8xf32>
    %57 = vector.multi_reduction <add>, %52, %cst_43 [1] : vector<8x32xf32> to vector<8xf32>
    %58 = vector.shape_cast %57 : vector<8xf32> to vector<8x1xf32>
    %cst_44 = arith.constant 3.200000e+01 : f32
    %59 = vector.broadcast %cst_44 : f32 to vector<8x1xf32>
    %60 = arith.divf %58, %59 : vector<8x1xf32>
    %61 = vector.broadcast %60 : vector<8x1xf32> to vector<8x32xf32>
    %62 = arith.subf %52, %61 : vector<8x32xf32>
    %63 = arith.mulf %62, %62 : vector<8x32xf32>
    %cst_45 = arith.constant dense<0.000000e+00> : vector<8xf32>
    %64 = vector.multi_reduction <add>, %63, %cst_45 [1] : vector<8x32xf32> to vector<8xf32>
    %65 = vector.shape_cast %64 : vector<8xf32> to vector<8x1xf32>
    %cst_46 = arith.constant 3.200000e+01 : f32
    %66 = vector.broadcast %cst_46 : f32 to vector<8x1xf32>
    %67 = arith.divf %65, %66 : vector<8x1xf32>
    %68 = vector.broadcast %60 : vector<8x1xf32> to vector<8x32xf32>
    %69 = arith.subf %52, %68 : vector<8x32xf32>
    %cst_47 = arith.constant 9.99999974E-6 : f32
    %70 = vector.broadcast %cst_47 : f32 to vector<8x1xf32>
    %71 = arith.addf %67, %70 : vector<8x1xf32>
    %72 = math.rsqrt %71 : vector<8x1xf32>
    %73 = vector.broadcast %72 : vector<8x1xf32> to vector<8x32xf32>
    %74 = arith.mulf %69, %73 : vector<8x32xf32>
    %75 = vector.shape_cast %54 : vector<32xf32> to vector<1x32xf32>
    %76 = vector.broadcast %75 : vector<1x32xf32> to vector<8x32xf32>
    %77 = arith.mulf %74, %76 : vector<8x32xf32>
    %78 = vector.shape_cast %56 : vector<32xf32> to vector<1x32xf32>
    %79 = vector.broadcast %78 : vector<1x32xf32> to vector<8x32xf32>
    %80 = arith.addf %77, %79 : vector<8x32xf32>
    %c0_48 = arith.constant 0 : index
    %c0_49 = arith.constant 0 : index
    %81 = vector.load %arg13[%c0_48, %c0_49] : memref<32x512xf32, #tpu.memory_space<vmem>>, vector<32x512xf32>
    %cst_50 = arith.constant dense<0.000000e+00> : vector<8x512xf32>
    %82 = tpu.matmul %80, %81, %cst_50 {dimension_numbers = #tpu.dot_dimension_numbers<[1], [0], [0], [1], [0, 0, 1, 1], [], []>} : vector<8x32xf32>, vector<32x512xf32>, vector<8x512xf32> -> vector<8x512xf32>
    %c0_51 = arith.constant 0 : index
    %c0_52 = arith.constant 0 : index
    %83 = vector.load %arg14[%c0_51, %c0_52] : memref<8x512xf32, #tpu.memory_space<vmem>>, vector<8x512xf32>
    %84 = arith.mulf %82, %83 : vector<8x512xf32>
    %c0_53 = arith.constant 0 : index
    %c0_54 = arith.constant 0 : index
    %85 = vector.load %arg15[%c0_53, %c0_54] : memref<8x512xf32, #tpu.memory_space<vmem>>, vector<8x512xf32>
    %86 = arith.addf %84, %85 : vector<8x512xf32>
    %c0_55 = arith.constant 0 : index
    %c0_56 = arith.constant 0 : index
    %87 = vector.load %arg16[%c0_55, %c0_56] : memref<512x32xf32, #tpu.memory_space<vmem>>, vector<512x32xf32>
    %cst_57 = arith.constant dense<0.000000e+00> : vector<8x32xf32>
    %88 = tpu.matmul %86, %87, %cst_57 {dimension_numbers = #tpu.dot_dimension_numbers<[1], [0], [0], [1], [0, 0, 1, 1], [], []>} : vector<8x512xf32>, vector<512x32xf32>, vector<8x32xf32> -> vector<8x32xf32>
    %c0_58 = arith.constant 0 : index
    %c0_59 = arith.constant 0 : index
    %89 = vector.load %arg17[%c0_58, %c0_59] : memref<8x32xf32, #tpu.memory_space<vmem>>, vector<8x32xf32>
    %90 = arith.addf %88, %89 : vector<8x32xf32>
    %91 = arith.addf %80, %90 : vector<8x32xf32>
    %c0_60 = arith.constant 0 : index
    %c0_61 = arith.constant 0 : index
    %92 = vector.load %arg18[%c0_60, %c0_61] : memref<1x32xf32, #tpu.memory_space<vmem>>, vector<1x32xf32>
    %93 = vector.shape_cast %92 : vector<1x32xf32> to vector<32xf32>
    %c0_62 = arith.constant 0 : index
    %c0_63 = arith.constant 0 : index
    %94 = vector.load %arg19[%c0_62, %c0_63] : memref<1x32xf32, #tpu.memory_space<vmem>>, vector<1x32xf32>
    %95 = vector.shape_cast %94 : vector<1x32xf32> to vector<32xf32>
    %cst_64 = arith.constant dense<0.000000e+00> : vector<8xf32>
    %96 = vector.multi_reduction <add>, %91, %cst_64 [1] : vector<8x32xf32> to vector<8xf32>
    %97 = vector.shape_cast %96 : vector<8xf32> to vector<8x1xf32>
    %cst_65 = arith.constant 3.200000e+01 : f32
    %98 = vector.broadcast %cst_65 : f32 to vector<8x1xf32>
    %99 = arith.divf %97, %98 : vector<8x1xf32>
    %100 = vector.broadcast %99 : vector<8x1xf32> to vector<8x32xf32>
    %101 = arith.subf %91, %100 : vector<8x32xf32>
    %102 = arith.mulf %101, %101 : vector<8x32xf32>
    %cst_66 = arith.constant dense<0.000000e+00> : vector<8xf32>
    %103 = vector.multi_reduction <add>, %102, %cst_66 [1] : vector<8x32xf32> to vector<8xf32>
    %104 = vector.shape_cast %103 : vector<8xf32> to vector<8x1xf32>
    %cst_67 = arith.constant 3.200000e+01 : f32
    %105 = vector.broadcast %cst_67 : f32 to vector<8x1xf32>
    %106 = arith.divf %104, %105 : vector<8x1xf32>
    %107 = vector.broadcast %99 : vector<8x1xf32> to vector<8x32xf32>
    %108 = arith.subf %91, %107 : vector<8x32xf32>
    %cst_68 = arith.constant 9.99999974E-6 : f32
    %109 = vector.broadcast %cst_68 : f32 to vector<8x1xf32>
    %110 = arith.addf %106, %109 : vector<8x1xf32>
    %111 = math.rsqrt %110 : vector<8x1xf32>
    %112 = vector.broadcast %111 : vector<8x1xf32> to vector<8x32xf32>
    %113 = arith.mulf %108, %112 : vector<8x32xf32>
    %114 = vector.shape_cast %93 : vector<32xf32> to vector<1x32xf32>
    %115 = vector.broadcast %114 : vector<1x32xf32> to vector<8x32xf32>
    %116 = arith.mulf %113, %115 : vector<8x32xf32>
    %117 = vector.shape_cast %95 : vector<32xf32> to vector<1x32xf32>
    %118 = vector.broadcast %117 : vector<1x32xf32> to vector<8x32xf32>
    %119 = arith.addf %116, %118 : vector<8x32xf32>
    %c0_69 = arith.constant 0 : index
    %c0_70 = arith.constant 0 : index
    %c0_71 = arith.constant 0 : index
    %120 = vector.load %arg20[%c0_69, %c0_70, %c0_71] : memref<1x8x32xf32, #tpu.memory_space<vmem>>, vector<1x8x32xf32>
    %121 = vector.shape_cast %120 : vector<1x8x32xf32> to vector<8x32xf32>
    %122 = vector.shape_cast %119 : vector<8x32xf32> to vector<1x8x32xf32>
    tpu.vector_store %arg20[%c0_69, %c0_70, %c0_71], %122 {strides = array<i32>} : memref<1x8x32xf32, #tpu.memory_space<vmem>>, vector<1x8x32xf32>,
    return
  }
  func.func @transform_0(%arg0: i32) -> (i32, i32, i32) {
    %c0_i32 = arith.constant 0 : i32
    %c0_i32_0 = arith.constant 0 : i32
    %c0_i32_1 = arith.constant 0 : i32
    return %arg0, %c0_i32, %c0_i32_0 : i32, i32, i32
  }
  func.func @transform_1(%arg0: i32) -> (i32, i32, i32) {
    %c0_i32 = arith.constant 0 : i32
    %c0_i32_0 = arith.constant 0 : i32
    %c0_i32_1 = arith.constant 0 : i32
    return %arg0, %c0_i32, %c0_i32_0 : i32, i32, i32
  }
  func.func @transform_2(%arg0: i32) -> (i32, i32, i32) {
    %c0_i32 = arith.constant 0 : i32
    %c0_i32_0 = arith.constant 0 : i32
    %c0_i32_1 = arith.constant 0 : i32
    %c0_i32_2 = arith.constant 0 : i32
    return %c0_i32, %c0_i32_0, %c0_i32_1 : i32, i32, i32
  }
  func.func @transform_3(%arg0: i32) -> (i32, i32, i32) {
    %c0_i32 = arith.constant 0 : i32
    %c0_i32_0 = arith.constant 0 : i32
    %c0_i32_1 = arith.constant 0 : i32
    %c0_i32_2 = arith.constant 0 : i32
    return %c0_i32, %c0_i32_0, %c0_i32_1 : i32, i32, i32
  }
  func.func @transform_4(%arg0: i32) -> (i32, i32, i32) {
    %c0_i32 = arith.constant 0 : i32
    %c0_i32_0 = arith.constant 0 : i32
    %c0_i32_1 = arith.constant 0 : i32
    %c0_i32_2 = arith.constant 0 : i32
    return %c0_i32, %c0_i32_0, %c0_i32_1 : i32, i32, i32
  }
  func.func @transform_5(%arg0: i32) -> (i32, i32, i32) {
    %c0_i32 = arith.constant 0 : i32
    %c0_i32_0 = arith.constant 0 : i32
    %c0_i32_1 = arith.constant 0 : i32
    %c0_i32_2 = arith.constant 0 : i32
    return %c0_i32, %c0_i32_0, %c0_i32_1 : i32, i32, i32
  }
  func.func @transform_6(%arg0: i32) -> (i32, i32, i32) {
    %c0_i32 = arith.constant 0 : i32
    %c0_i32_0 = arith.constant 0 : i32
    %c0_i32_1 = arith.constant 0 : i32
    %c0_i32_2 = arith.constant 0 : i32
    return %c0_i32, %c0_i32_0, %c0_i32_1 : i32, i32, i32
  }
  func.func @transform_7(%arg0: i32) -> (i32, i32, i32) {
    %c0_i32 = arith.constant 0 : i32
    %c0_i32_0 = arith.constant 0 : i32
    %c0_i32_1 = arith.constant 0 : i32
    %c0_i32_2 = arith.constant 0 : i32
    return %c0_i32, %c0_i32_0, %c0_i32_1 : i32, i32, i32
  }
  func.func @transform_8(%arg0: i32) -> (i32, i32, i32) {
    %c0_i32 = arith.constant 0 : i32
    %c0_i32_0 = arith.constant 0 : i32
    %c0_i32_1 = arith.constant 0 : i32
    %c0_i32_2 = arith.constant 0 : i32
    return %c0_i32, %c0_i32_0, %c0_i32_1 : i32, i32, i32
  }
  func.func @transform_9(%arg0: i32) -> (i32, i32) {
    %c0_i32 = arith.constant 0 : i32
    %c0_i32_0 = arith.constant 0 : i32
    %c0_i32_1 = arith.constant 0 : i32
    return %c0_i32, %c0_i32_0 : i32, i32
  }
  func.func @transform_10(%arg0: i32) -> (i32, i32) {
    %c0_i32 = arith.constant 0 : i32
    %c0_i32_0 = arith.constant 0 : i32
    %c0_i32_1 = arith.constant 0 : i32
    return %c0_i32, %c0_i32_0 : i32, i32
  }
  func.func @transform_11(%arg0: i32) -> (i32, i32) {
    %c0_i32 = arith.constant 0 : i32
    %c0_i32_0 = arith.constant 0 : i32
    %c0_i32_1 = arith.constant 0 : i32
    return %c0_i32, %c0_i32_0 : i32, i32
  }
  func.func @transform_12(%arg0: i32) -> (i32, i32) {
    %c0_i32 = arith.constant 0 : i32
    %c0_i32_0 = arith.constant 0 : i32
    %c0_i32_1 = arith.constant 0 : i32
    return %c0_i32, %c0_i32_0 : i32, i32
  }
  func.func @transform_13(%arg0: i32) -> (i32, i32) {
    %c0_i32 = arith.constant 0 : i32
    %c0_i32_0 = arith.constant 0 : i32
    %c0_i32_1 = arith.constant 0 : i32
    return %c0_i32, %c0_i32_0 : i32, i32
  }
  func.func @transform_14(%arg0: i32) -> (i32, i32) {
    %c0_i32 = arith.constant 0 : i32
    %c0_i32_0 = arith.constant 0 : i32
    %c0_i32_1 = arith.constant 0 : i32
    return %c0_i32, %c0_i32_0 : i32, i32
  }
  func.func @transform_15(%arg0: i32) -> (i32, i32) {
    %c0_i32 = arith.constant 0 : i32
    %c0_i32_0 = arith.constant 0 : i32
    %c0_i32_1 = arith.constant 0 : i32
    return %c0_i32, %c0_i32_0 : i32, i32
  }
  func.func @transform_16(%arg0: i32) -> (i32, i32) {
    %c0_i32 = arith.constant 0 : i32
    %c0_i32_0 = arith.constant 0 : i32
    %c0_i32_1 = arith.constant 0 : i32
    return %c0_i32, %c0_i32_0 : i32, i32
  }
  func.func @transform_17(%arg0: i32) -> (i32, i32) {
    %c0_i32 = arith.constant 0 : i32
    %c0_i32_0 = arith.constant 0 : i32
    %c0_i32_1 = arith.constant 0 : i32
    return %c0_i32, %c0_i32_0 : i32, i32
  }
  func.func @transform_18(%arg0: i32) -> (i32, i32) {
    %c0_i32 = arith.constant 0 : i32
    %c0_i32_0 = arith.constant 0 : i32
    %c0_i32_1 = arith.constant 0 : i32
    return %c0_i32, %c0_i32_0 : i32, i32
  }
  func.func @transform_19(%arg0: i32) -> (i32, i32, i32) {
    %c0_i32 = arith.constant 0 : i32
    %c0_i32_0 = arith.constant 0 : i32
    %c0_i32_1 = arith.constant 0 : i32
    return %arg0, %c0_i32, %c0_i32_0 : i32, i32, i32
  }
}

</mosaic_0001>

<llo_original>
// kernel: tpu_custom_call.1
$region0: #{tpu_custom_call.1}
  #allocation0 [shape = 'u32[]', space=smem, size = 0x4, offset = 0x4, fixed_abs, tag = 'smem constant byte address 0x4 - core index']
  #allocation1 [shape = 'u32[72,128]{1,0:T(1,128)}', space=vmem, size = 0x9000, scoped, tag = 'internal scratch']
  %s0 = inlined_call_operand.vmem [shape: f32[2,8,32], index: 0, kind: input, shape index: {}]
  %s1 = inlined_call_operand.vmem [shape: s32[2,8,8], index: 1, kind: input, shape index: {}]
  %s2 = inlined_call_operand.vmem [shape: f32[4,32,8], index: 2, kind: input, shape index: {}]
  %s3 = inlined_call_operand.vmem [shape: f32[4,1,8], index: 3, kind: input, shape index: {}]
  %s4 = inlined_call_operand.vmem [shape: f32[4,32,8], index: 4, kind: input, shape index: {}]
  %s5 = inlined_call_operand.vmem [shape: f32[4,1,8], index: 5, kind: input, shape index: {}]
  %s6 = inlined_call_operand.vmem [shape: f32[4,32,8], index: 6, kind: input, shape index: {}]
  %s7 = inlined_call_operand.vmem [shape: f32[4,1,8], index: 7, kind: input, shape index: {}]
  %s8 = inlined_call_operand.vmem [shape: f32[4,8,32], index: 8, kind: input, shape index: {}]
  %s9 = inlined_call_operand.vmem [shape: f32[1,32], index: 9, kind: input, shape index: {}]
  %s10 = inlined_call_operand.vmem [shape: f32[1,32], index: 10, kind: input, shape index: {}]
  %s11 = inlined_call_operand.vmem [shape: f32[1,32], index: 11, kind: input, shape index: {}]
  %s12 = inlined_call_operand.vmem [shape: f32[32,512], index: 12, kind: input, shape index: {}]
  %s13 = inlined_call_operand.vmem [shape: f32[8,512], index: 13, kind: input, shape index: {}]
  %s14 = inlined_call_operand.vmem [shape: f32[8,512], index: 14, kind: input, shape index: {}]
  %s15 = inlined_call_operand.vmem [shape: f32[512,32], index: 15, kind: input, shape index: {}]
  %s16 = inlined_call_operand.vmem [shape: f32[8,32], index: 16, kind: input, shape index: {}]
  %s17 = inlined_call_operand.vmem [shape: f32[1,32], index: 17, kind: input, shape index: {}]
  %s18 = inlined_call_operand.vmem [shape: f32[1,32], index: 18, kind: input, shape index: {}]
  %s19 = inlined_call_operand.hbm [shape: f32[2,8,32], index: 19, kind: output, shape index: {}]
  %s20 = sld [smem:[#allocation0]]
  $region109: #{tpu_custom_call.1} parent=0
    _
  %s22 = ssub.s32 1, %s20
  %s23 = scalar_select 0, %s22, %s20
  $region1: #{tpu_custom_call.1} parent=0
    #allocation2 [shape = 'u8[8192]{0}', space=vmem, size = 0x2000, scoped, tag = 'output window, operand 0']
    #allocation3 [shape = 's32[2]{0}', space=sflag, size = 0x8, scoped, tag = 'scoped memory for tpu_custom_call.1']
    %24 = vsyncpa [#allocation3], 0
    %s25 = scalar_lea.sflag [#allocation3], 1
    %26 = vsyncpa %s25, 0
    loop: start=0, step=1, limit=4
    $region2: #{tpu_custom_call.1} parent=1 // loop_pre_header
      _
    $region3: #{tpu_custom_call.1} parent=1 // loop_header
      %s28 = sphi 0, %s32
      %p29 = scmp.ge.s32.totalorder %s28, 4
      %s38 = sphi 0, %s40
      %s41 = sphi 0, %s38
      %s42 = sphi 0, %s41
      %s58 = sphi 0, %s42
      %s64 = sphi 0, %s66
      %s67 = sphi 0, %s64
      %s68 = sphi 0, %s67
      %s84 = sphi 0, %s68
      %s88 = sphi 0, %s88
      %s90 = sphi 0, %s88
      %s91 = sphi 0, %s90
      %s105 = sphi 0, %s91
      %s109 = sphi 0, %s109
      %s111 = sphi 0, %s109
      %s112 = sphi 0, %s111
      %s126 = sphi 0, %s112
      %s130 = sphi 0, %s130
      %s132 = sphi 0, %s130
      %s133 = sphi 0, %s132
      %s147 = sphi 0, %s133
      %s151 = sphi 0, %s151
      %s153 = sphi 0, %s151
      %s154 = sphi 0, %s153
      %s168 = sphi 0, %s154
      %s172 = sphi 0, %s172
      %s174 = sphi 0, %s172
      %s175 = sphi 0, %s174
      %s189 = sphi 0, %s175
      %s193 = sphi 0, %s193
      %s195 = sphi 0, %s193
      %s196 = sphi 0, %s195
      %s210 = sphi 0, %s196
      %s214 = sphi 0, %s214
      %s216 = sphi 0, %s214
      %s217 = sphi 0, %s216
      %s231 = sphi 0, %s217
      %s235 = sphi 0, %s235
      %s237 = sphi 0, %s235
      %s238 = sphi 0, %s237
      %s252 = sphi 0, %s238
      %s256 = sphi 0, %s256
      %s258 = sphi 0, %s256
      %s259 = sphi 0, %s258
      %s273 = sphi 0, %s259
      %s277 = sphi 0, %s277
      %s279 = sphi 0, %s277
      %s280 = sphi 0, %s279
      %s294 = sphi 0, %s280
      %s298 = sphi 0, %s298
      %s300 = sphi 0, %s298
      %s301 = sphi 0, %s300
      %s315 = sphi 0, %s301
      %s319 = sphi 0, %s319
      %s321 = sphi 0, %s319
      %s322 = sphi 0, %s321
      %s336 = sphi 0, %s322
      %s340 = sphi 0, %s340
      %s342 = sphi 0, %s340
      %s343 = sphi 0, %s342
      %s357 = sphi 0, %s343
      %s361 = sphi 0, %s361
      %s363 = sphi 0, %s361
      %s364 = sphi 0, %s363
      %s378 = sphi 0, %s364
      %s382 = sphi 0, %s382
      %s384 = sphi 0, %s382
      %s385 = sphi 0, %s384
      %s399 = sphi 0, %s385
      %s403 = sphi 0, %s403
      %s405 = sphi 0, %s403
      %s406 = sphi 0, %s405
      %s420 = sphi 0, %s406
      %s424 = sphi 0, %s424
      %s426 = sphi 0, %s424
      %s427 = sphi 0, %s426
      %s441 = sphi 0, %s427
      %s447 = sphi 0, %s449
      %s450 = sphi 0, %s447
      %s451 = sphi 0, %s450
      %s467 = sphi 0, %s451
    $region4: #{tpu_custom_call.1} parent=1 // loop_header_branch
      %31 = sbr.rel (%p29) target = $region8
    $region5: #{tpu_custom_call.1} parent=1 // loop_body
      %s33 = ssub.s32 %s28, 1
      %s34 = ssub.s32 %s28, 2
      %s35 = sadd.s32 %s28, 1
      %s36 = ssub.s32 %s28, %s35
      %p37 = scmp.eq.s32.totalorder %s36, 0
      %s39 = sadd.s32 %s38, 1
      %s40 = scalar_select %p37, %s38, %s39
      %p43 = pneg %p37
      %p44 = scmp.eq.s32.totalorder %s28, 1
      %p45 = por %p43, %p44
      %p46 = scmp.ne.s32.totalorder %s38, %s41
      %p47 = scmp.eq.s32.totalorder %s28, 0
      %p48 = por %p46, %p47
      %p49 = scmp.ne.s32.totalorder %s38, %s41
      %p50 = scmp.eq.s32.totalorder %s33, 1
      %p51 = por %p49, %p50
      %p52 = scmp.ne.s32.totalorder %s41, %s42
      %p53 = scmp.eq.s32.totalorder %s33, 0
      %p54 = por %p52, %p53
      %p55 = scmp.ne.s32.totalorder %s41, %s42
      %p56 = scmp.eq.s32.totalorder %s34, 1
      %p57 = por %p55, %p56
      %p59 = scmp.ne.s32.totalorder %s42, %s58
      %p60 = scmp.eq.s32.totalorder %s34, 0
      %p61 = por %p59, %p60
      %s62 = ssub.s32 %s28, %s35
      %p63 = scmp.eq.s32.totalorder %s62, 0
      %s65 = sadd.s32 %s64, 1
      %s66 = scalar_select %p63, %s64, %s65
      %p69 = pneg %p63
      %p70 = scmp.eq.s32.totalorder %s28, 1
      %p71 = por %p69, %p70
      %p72 = scmp.ne.s32.totalorder %s64, %s67
      %p73 = scmp.eq.s32.totalorder %s28, 0
      %p74 = por %p72, %p73
      %p75 = scmp.ne.s32.totalorder %s64, %s67
      %p76 = scmp.eq.s32.totalorder %s33, 1
      %p77 = por %p75, %p76
      %p78 = scmp.ne.s32.totalorder %s67, %s68
      %p79 = scmp.eq.s32.totalorder %s33, 0
      %p80 = por %p78, %p79
      %p81 = scmp.ne.s32.totalorder %s67, %s68
      %p82 = scmp.eq.s32.totalorder %s34, 1
      %p83 = por %p81, %p82
      %p85 = scmp.ne.s32.totalorder %s68, %s84
      %p86 = scmp.eq.s32.totalorder %s34, 0
      %p87 = por %p85, %p86
      %s89 = sadd.s32 %s88, 1
      %p92 = scmp.eq.s32.totalorder %s28, 1
      %p93 = scmp.ne.s32.totalorder %s88, %s90
      %p94 = scmp.eq.s32.totalorder %s28, 0
      %p95 = por %p93, %p94
      %p96 = scmp.ne.s32.totalorder %s88, %s90
      %p97 = scmp.eq.s32.totalorder %s33, 1
      %p98 = por %p96, %p97
      %p99 = scmp.ne.s32.totalorder %s90, %s91
      %p100 = scmp.eq.s32.totalorder %s33, 0
      %p101 = por %p99, %p100
      %p102 = scmp.ne.s32.totalorder %s90, %s91
      %p103 = scmp.eq.s32.totalorder %s34, 1
      %p104 = por %p102, %p103
      %p106 = scmp.ne.s32.totalorder %s91, %s105
      %p107 = scmp.eq.s32.totalorder %s34, 0
      %p108 = por %p106, %p107
      %s110 = sadd.s32 %s109, 1
      %p113 = scmp.eq.s32.totalorder %s28, 1
      %p114 = scmp.ne.s32.totalorder %s109, %s111
      %p115 = scmp.eq.s32.totalorder %s28, 0
      %p116 = por %p114, %p115
      %p117 = scmp.ne.s32.totalorder %s109, %s111
      %p118 = scmp.eq.s32.totalorder %s33, 1
      %p119 = por %p117, %p118
      %p120 = scmp.ne.s32.totalorder %s111, %s112
      %p121 = scmp.eq.s32.totalorder %s33, 0
      %p122 = por %p120, %p121
      %p123 = scmp.ne.s32.totalorder %s111, %s112
      %p124 = scmp.eq.s32.totalorder %s34, 1
      %p125 = por %p123, %p124
      %p127 = scmp.ne.s32.totalorder %s112, %s126
      %p128 = scmp.eq.s32.totalorder %s34, 0
      %p129 = por %p127, %p128
      %s131 = sadd.s32 %s130, 1
      %p134 = scmp.eq.s32.totalorder %s28, 1
      %p135 = scmp.ne.s32.totalorder %s130, %s132
      %p136 = scmp.eq.s32.totalorder %s28, 0
      %p137 = por %p135, %p136
      %p138 = scmp.ne.s32.totalorder %s130, %s132
      %p139 = scmp.eq.s32.totalorder %s33, 1
      %p140 = por %p138, %p139
      %p141 = scmp.ne.s32.totalorder %s132, %s133
      %p142 = scmp.eq.s32.totalorder %s33, 0
      %p143 = por %p141, %p142
      %p144 = scmp.ne.s32.totalorder %s132, %s133
      %p145 = scmp.eq.s32.totalorder %s34, 1
      %p146 = por %p144, %p145
      %p148 = scmp.ne.s32.totalorder %s133, %s147
      %p149 = scmp.eq.s32.totalorder %s34, 0
      %p150 = por %p148, %p149
      %s152 = sadd.s32 %s151, 1
      %p155 = scmp.eq.s32.totalorder %s28, 1
      %p156 = scmp.ne.s32.totalorder %s151, %s153
      %p157 = scmp.eq.s32.totalorder %s28, 0
      %p158 = por %p156, %p157
      %p159 = scmp.ne.s32.totalorder %s151, %s153
      %p160 = scmp.eq.s32.totalorder %s33, 1
      %p161 = por %p159, %p160
      %p162 = scmp.ne.s32.totalorder %s153, %s154
      %p163 = scmp.eq.s32.totalorder %s33, 0
      %p164 = por %p162, %p163
      %p165 = scmp.ne.s32.totalorder %s153, %s154
      %p166 = scmp.eq.s32.totalorder %s34, 1
      %p167 = por %p165, %p166
      %p169 = scmp.ne.s32.totalorder %s154, %s168
      %p170 = scmp.eq.s32.totalorder %s34, 0
      %p171 = por %p169, %p170
      %s173 = sadd.s32 %s172, 1
      %p176 = scmp.eq.s32.totalorder %s28, 1
      %p177 = scmp.ne.s32.totalorder %s172, %s174
      %p178 = scmp.eq.s32.totalorder %s28, 0
      %p179 = por %p177, %p178
      %p180 = scmp.ne.s32.totalorder %s172, %s174
      %p181 = scmp.eq.s32.totalorder %s33, 1
      %p182 = por %p180, %p181
      %p183 = scmp.ne.s32.totalorder %s174, %s175
      %p184 = scmp.eq.s32.totalorder %s33, 0
      %p185 = por %p183, %p184
      %p186 = scmp.ne.s32.totalorder %s174, %s175
      %p187 = scmp.eq.s32.totalorder %s34, 1
      %p188 = por %p186, %p187
      %p190 = scmp.ne.s32.totalorder %s175, %s189
      %p191 = scmp.eq.s32.totalorder %s34, 0
      %p192 = por %p190, %p191
      %s194 = sadd.s32 %s193, 1
      %p197 = scmp.eq.s32.totalorder %s28, 1
      %p198 = scmp.ne.s32.totalorder %s193, %s195
      %p199 = scmp.eq.s32.totalorder %s28, 0
      %p200 = por %p198, %p199
      %p201 = scmp.ne.s32.totalorder %s193, %s195
      %p202 = scmp.eq.s32.totalorder %s33, 1
      %p203 = por %p201, %p202
      %p204 = scmp.ne.s32.totalorder %s195, %s196
      %p205 = scmp.eq.s32.totalorder %s33, 0
      %p206 = por %p204, %p205
      %p207 = scmp.ne.s32.totalorder %s195, %s196
      %p208 = scmp.eq.s32.totalorder %s34, 1
      %p209 = por %p207, %p208
      %p211 = scmp.ne.s32.totalorder %s196, %s210
      %p212 = scmp.eq.s32.totalorder %s34, 0
      %p213 = por %p211, %p212
      %s215 = sadd.s32 %s214, 1
      %p218 = scmp.eq.s32.totalorder %s28, 1
      %p219 = scmp.ne.s32.totalorder %s214, %s216
      %p220 = scmp.eq.s32.totalorder %s28, 0
      %p221 = por %p219, %p220
      %p222 = scmp.ne.s32.totalorder %s214, %s216
      %p223 = scmp.eq.s32.totalorder %s33, 1
      %p224 = por %p222, %p223
      %p225 = scmp.ne.s32.totalorder %s216, %s217
      %p226 = scmp.eq.s32.totalorder %s33, 0
      %p227 = por %p225, %p226
      %p228 = scmp.ne.s32.totalorder %s216, %s217
      %p229 = scmp.eq.s32.totalorder %s34, 1
      %p230 = por %p228, %p229
      %p232 = scmp.ne.s32.totalorder %s217, %s231
      %p233 = scmp.eq.s32.totalorder %s34, 0
      %p234 = por %p232, %p233
      %s236 = sadd.s32 %s235, 1
      %p239 = scmp.eq.s32.totalorder %s28, 1
      %p240 = scmp.ne.s32.totalorder %s235, %s237
      %p241 = scmp.eq.s32.totalorder %s28, 0
      %p242 = por %p240, %p241
      %p243 = scmp.ne.s32.totalorder %s235, %s237
      %p244 = scmp.eq.s32.totalorder %s33, 1
      %p245 = por %p243, %p244
      %p246 = scmp.ne.s32.totalorder %s237, %s238
      %p247 = scmp.eq.s32.totalorder %s33, 0
      %p248 = por %p246, %p247
      %p249 = scmp.ne.s32.totalorder %s237, %s238
      %p250 = scmp.eq.s32.totalorder %s34, 1
      %p251 = por %p249, %p250
      %p253 = scmp.ne.s32.totalorder %s238, %s252
      %p254 = scmp.eq.s32.totalorder %s34, 0
      %p255 = por %p253, %p254
      %s257 = sadd.s32 %s256, 1
      %p260 = scmp.eq.s32.totalorder %s28, 1
      %p261 = scmp.ne.s32.totalorder %s256, %s258
      %p262 = scmp.eq.s32.totalorder %s28, 0
      %p263 = por %p261, %p262
      %p264 = scmp.ne.s32.totalorder %s256, %s258
      %p265 = scmp.eq.s32.totalorder %s33, 1
      %p266 = por %p264, %p265
      %p267 = scmp.ne.s32.totalorder %s258, %s259
      %p268 = scmp.eq.s32.totalorder %s33, 0
      %p269 = por %p267, %p268
      %p270 = scmp.ne.s32.totalorder %s258, %s259
      %p271 = scmp.eq.s32.totalorder %s34, 1
      %p272 = por %p270, %p271
      %p274 = scmp.ne.s32.totalorder %s259, %s273
      %p275 = scmp.eq.s32.totalorder %s34, 0
      %p276 = por %p274, %p275
      %s278 = sadd.s32 %s277, 1
      %p281 = scmp.eq.s32.totalorder %s28, 1
      %p282 = scmp.ne.s32.totalorder %s277, %s279
      %p283 = scmp.eq.s32.totalorder %s28, 0
      %p284 = por %p282, %p283
      %p285 = scmp.ne.s32.totalorder %s277, %s279
      %p286 = scmp.eq.s32.totalorder %s33, 1
      %p287 = por %p285, %p286
      %p288 = scmp.ne.s32.totalorder %s279, %s280
      %p289 = scmp.eq.s32.totalorder %s33, 0
      %p290 = por %p288, %p289
      %p291 = scmp.ne.s32.totalorder %s279, %s280
      %p292 = scmp.eq.s32.totalorder %s34, 1
      %p293 = por %p291, %p292
      %p295 = scmp.ne.s32.totalorder %s280, %s294
      %p296 = scmp.eq.s32.totalorder %s34, 0
      %p297 = por %p295, %p296
      %s299 = sadd.s32 %s298, 1
      %p302 = scmp.eq.s32.totalorder %s28, 1
      %p303 = scmp.ne.s32.totalorder %s298, %s300
      %p304 = scmp.eq.s32.totalorder %s28, 0
      %p305 = por %p303, %p304
      %p306 = scmp.ne.s32.totalorder %s298, %s300
      %p307 = scmp.eq.s32.totalorder %s33, 1
      %p308 = por %p306, %p307
      %p309 = scmp.ne.s32.totalorder %s300, %s301
      %p310 = scmp.eq.s32.totalorder %s33, 0
      %p311 = por %p309, %p310
      %p312 = scmp.ne.s32.totalorder %s300, %s301
      %p313 = scmp.eq.s32.totalorder %s34, 1
      %p314 = por %p312, %p313
      %p316 = scmp.ne.s32.totalorder %s301, %s315
      %p317 = scmp.eq.s32.totalorder %s34, 0
      %p318 = por %p316, %p317
      %s320 = sadd.s32 %s319, 1
      %p323 = scmp.eq.s32.totalorder %s28, 1
      %p324 = scmp.ne.s32.totalorder %s319, %s321
      %p325 = scmp.eq.s32.totalorder %s28, 0
      %p326 = por %p324, %p325
      %p327 = scmp.ne.s32.totalorder %s319, %s321
      %p328 = scmp.eq.s32.totalorder %s33, 1
      %p329 = por %p327, %p328
      %p330 = scmp.ne.s32.totalorder %s321, %s322
      %p331 = scmp.eq.s32.totalorder %s33, 0
      %p332 = por %p330, %p331
      %p333 = scmp.ne.s32.totalorder %s321, %s322
      %p334 = scmp.eq.s32.totalorder %s34, 1
      %p335 = por %p333, %p334
      %p337 = scmp.ne.s32.totalorder %s322, %s336
      %p338 = scmp.eq.s32.totalorder %s34, 0
      %p339 = por %p337, %p338
      %s341 = sadd.s32 %s340, 1
      %p344 = scmp.eq.s32.totalorder %s28, 1
      %p345 = scmp.ne.s32.totalorder %s340, %s342
      %p346 = scmp.eq.s32.totalorder %s28, 0
      %p347 = por %p345, %p346
      %p348 = scmp.ne.s32.totalorder %s340, %s342
      %p349 = scmp.eq.s32.totalorder %s33, 1
      %p350 = por %p348, %p349
      %p351 = scmp.ne.s32.totalorder %s342, %s343
      %p352 = scmp.eq.s32.totalorder %s33, 0
      %p353 = por %p351, %p352
      %p354 = scmp.ne.s32.totalorder %s342, %s343
      %p355 = scmp.eq.s32.totalorder %s34, 1
      %p356 = por %p354, %p355
      %p358 = scmp.ne.s32.totalorder %s343, %s357
      %p359 = scmp.eq.s32.totalorder %s34, 0
      %p360 = por %p358, %p359
      %s362 = sadd.s32 %s361, 1
      %p365 = scmp.eq.s32.totalorder %s28, 1
      %p366 = scmp.ne.s32.totalorder %s361, %s363
      %p367 = scmp.eq.s32.totalorder %s28, 0
      %p368 = por %p366, %p367
      %p369 = scmp.ne.s32.totalorder %s361, %s363
      %p370 = scmp.eq.s32.totalorder %s33, 1
      %p371 = por %p369, %p370
      %p372 = scmp.ne.s32.totalorder %s363, %s364
      %p373 = scmp.eq.s32.totalorder %s33, 0
      %p374 = por %p372, %p373
      %p375 = scmp.ne.s32.totalorder %s363, %s364
      %p376 = scmp.eq.s32.totalorder %s34, 1
      %p377 = por %p375, %p376
      %p379 = scmp.ne.s32.totalorder %s364, %s378
      %p380 = scmp.eq.s32.totalorder %s34, 0
      %p381 = por %p379, %p380
      %s383 = sadd.s32 %s382, 1
      %p386 = scmp.eq.s32.totalorder %s28, 1
      %p387 = scmp.ne.s32.totalorder %s382, %s384
      %p388 = scmp.eq.s32.totalorder %s28, 0
      %p389 = por %p387, %p388
      %p390 = scmp.ne.s32.totalorder %s382, %s384
      %p391 = scmp.eq.s32.totalorder %s33, 1
      %p392 = por %p390, %p391
      %p393 = scmp.ne.s32.totalorder %s384, %s385
      %p394 = scmp.eq.s32.totalorder %s33, 0
      %p395 = por %p393, %p394
      %p396 = scmp.ne.s32.totalorder %s384, %s385
      %p397 = scmp.eq.s32.totalorder %s34, 1
      %p398 = por %p396, %p397
      %p400 = scmp.ne.s32.totalorder %s385, %s399
      %p401 = scmp.eq.s32.totalorder %s34, 0
      %p402 = por %p400, %p401
      %s404 = sadd.s32 %s403, 1
      %p407 = scmp.eq.s32.totalorder %s28, 1
      %p408 = scmp.ne.s32.totalorder %s403, %s405
      %p409 = scmp.eq.s32.totalorder %s28, 0
      %p410 = por %p408, %p409
      %p411 = scmp.ne.s32.totalorder %s403, %s405
      %p412 = scmp.eq.s32.totalorder %s33, 1
      %p413 = por %p411, %p412
      %p414 = scmp.ne.s32.totalorder %s405, %s406
      %p415 = scmp.eq.s32.totalorder %s33, 0
      %p416 = por %p414, %p415
      %p417 = scmp.ne.s32.totalorder %s405, %s406
      %p418 = scmp.eq.s32.totalorder %s34, 1
      %p419 = por %p417, %p418
      %p421 = scmp.ne.s32.totalorder %s406, %s420
      %p422 = scmp.eq.s32.totalorder %s34, 0
      %p423 = por %p421, %p422
      %s425 = sadd.s32 %s424, 1
      %p428 = scmp.eq.s32.totalorder %s28, 1
      %p429 = scmp.ne.s32.totalorder %s424, %s426
      %p430 = scmp.eq.s32.totalorder %s28, 0
      %p431 = por %p429, %p430
      %p432 = scmp.ne.s32.totalorder %s424, %s426
      %p433 = scmp.eq.s32.totalorder %s33, 1
      %p434 = por %p432, %p433
      %p435 = scmp.ne.s32.totalorder %s426, %s427
      %p436 = scmp.eq.s32.totalorder %s33, 0
      %p437 = por %p435, %p436
      %p438 = scmp.ne.s32.totalorder %s426, %s427
      %p439 = scmp.eq.s32.totalorder %s34, 1
      %p440 = por %p438, %p439
      %p442 = scmp.ne.s32.totalorder %s427, %s441
      %p443 = scmp.eq.s32.totalorder %s34, 0
      %p444 = por %p442, %p443
      %s445 = ssub.s32 %s28, %s35
      %p446 = scmp.eq.s32.totalorder %s445, 0
      %s448 = sadd.s32 %s447, 1
      %s449 = scalar_select %p446, %s447, %s448
      %p452 = pneg %p446
      %p453 = scmp.eq.s32.totalorder %s28, 1
      %p454 = por %p452, %p453
      %p455 = scmp.ne.s32.totalorder %s447, %s450
      %p456 = scmp.eq.s32.totalorder %s28, 0
      %p457 = por %p455, %p456
      %p458 = scmp.ne.s32.totalorder %s447, %s450
      %p459 = scmp.eq.s32.totalorder %s33, 1
      %p460 = por %p458, %p459
      %p461 = scmp.ne.s32.totalorder %s450, %s451
      %p462 = scmp.eq.s32.totalorder %s33, 0
      %p463 = por %p461, %p462
      %p464 = scmp.ne.s32.totalorder %s450, %s451
      %p465 = scmp.eq.s32.totalorder %s34, 1
      %p466 = por %p464, %p465
      %p468 = scmp.ne.s32.totalorder %s451, %s467
      %p469 = scmp.eq.s32.totalorder %s34, 0
      %p470 = por %p468, %p469
      %p471 = scmp.le.s32.totalorder 1, %s28
      %p472 = scmp.lt.s32.totalorder %s28, 3
      %p473 = pnand %p471, %p472
      %p474 = pneg %p473
      // Predicated region
      $region9: #{tpu_custom_call.1} parent=5 // pred_check
        _
      $region10: #{tpu_custom_call.1} parent=5 // pred_check_branch
        %476 = sbr.rel (%p473) target = $region12
      $region11: #{tpu_custom_call.1} parent=5 // pred_region
        %s477 = ssub.s32 %s28, 1
        // Predicated region
        $region13: #{tpu_custom_call.1} parent=11 // pred_check
          %p478 = pneg %p101
        $region14: #{tpu_custom_call.1} parent=11 // pred_check_branch
          %480 = sbr.rel (%p478) target = $region16
        $region15: #{tpu_custom_call.1} parent=11 // pred_region
          _
        $region16: #{tpu_custom_call.1} parent=11 // pred_fallthru
          _
        // Predicated region
        $region17: #{tpu_custom_call.1} parent=11 // pred_check
          %p481 = pneg %p122
        $region18: #{tpu_custom_call.1} parent=11 // pred_check_branch
          %483 = sbr.rel (%p481) target = $region20
        $region19: #{tpu_custom_call.1} parent=11 // pred_region
          _
        $region20: #{tpu_custom_call.1} parent=11 // pred_fallthru
          _
        // Predicated region
        $region21: #{tpu_custom_call.1} parent=11 // pred_check
          %p484 = pneg %p143
        $region22: #{tpu_custom_call.1} parent=11 // pred_check_branch
          %486 = sbr.rel (%p484) target = $region24
        $region23: #{tpu_custom_call.1} parent=11 // pred_region
          _
        $region24: #{tpu_custom_call.1} parent=11 // pred_fallthru
          _
        // Predicated region
        $region25: #{tpu_custom_call.1} parent=11 // pred_check
          %p487 = pneg %p164
        $region26: #{tpu_custom_call.1} parent=11 // pred_check_branch
          %489 = sbr.rel (%p487) target = $region28
        $region27: #{tpu_custom_call.1} parent=11 // pred_region
          _
        $region28: #{tpu_custom_call.1} parent=11 // pred_fallthru
          _
        // Predicated region
        $region29: #{tpu_custom_call.1} parent=11 // pred_check
          %p490 = pneg %p185
        $region30: #{tpu_custom_call.1} parent=11 // pred_check_branch
          %492 = sbr.rel (%p490) target = $region32
        $region31: #{tpu_custom_call.1} parent=11 // pred_region
          _
        $region32: #{tpu_custom_call.1} parent=11 // pred_fallthru
          _
        // Predicated region
        $region33: #{tpu_custom_call.1} parent=11 // pred_check
          %p493 = pneg %p206
        $region34: #{tpu_custom_call.1} parent=11 // pred_check_branch
          %495 = sbr.rel (%p493) target = $region36
        $region35: #{tpu_custom_call.1} parent=11 // pred_region
          _
        $region36: #{tpu_custom_call.1} parent=11 // pred_fallthru
          _
        // Predicated region
        $region37: #{tpu_custom_call.1} parent=11 // pred_check
          %p496 = pneg %p227
        $region38: #{tpu_custom_call.1} parent=11 // pred_check_branch
          %498 = sbr.rel (%p496) target = $region40
        $region39: #{tpu_custom_call.1} parent=11 // pred_region
          _
        $region40: #{tpu_custom_call.1} parent=11 // pred_fallthru
          _
        // Predicated region
        $region41: #{tpu_custom_call.1} parent=11 // pred_check
          %p499 = pneg %p248
        $region42: #{tpu_custom_call.1} parent=11 // pred_check_branch
          %501 = sbr.rel (%p499) target = $region44
        $region43: #{tpu_custom_call.1} parent=11 // pred_region
          _
        $region44: #{tpu_custom_call.1} parent=11 // pred_fallthru
          _
        // Predicated region
        $region45: #{tpu_custom_call.1} parent=11 // pred_check
          %p502 = pneg %p269
        $region46: #{tpu_custom_call.1} parent=11 // pred_check_branch
          %504 = sbr.rel (%p502) target = $region48
        $region47: #{tpu_custom_call.1} parent=11 // pred_region
          _
        $region48: #{tpu_custom_call.1} parent=11 // pred_fallthru
          _
        // Predicated region
        $region49: #{tpu_custom_call.1} parent=11 // pred_check
          %p505 = pneg %p290
        $region50: #{tpu_custom_call.1} parent=11 // pred_check_branch
          %507 = sbr.rel (%p505) target = $region52
        $region51: #{tpu_custom_call.1} parent=11 // pred_region
          _
        $region52: #{tpu_custom_call.1} parent=11 // pred_fallthru
          _
        // Predicated region
        $region53: #{tpu_custom_call.1} parent=11 // pred_check
          %p508 = pneg %p311
        $region54: #{tpu_custom_call.1} parent=11 // pred_check_branch
          %510 = sbr.rel (%p508) target = $region56
        $region55: #{tpu_custom_call.1} parent=11 // pred_region
          _
        $region56: #{tpu_custom_call.1} parent=11 // pred_fallthru
          _
        // Predicated region
        $region57: #{tpu_custom_call.1} parent=11 // pred_check
          %p511 = pneg %p332
        $region58: #{tpu_custom_call.1} parent=11 // pred_check_branch
          %513 = sbr.rel (%p511) target = $region60
        $region59: #{tpu_custom_call.1} parent=11 // pred_region
          _
        $region60: #{tpu_custom_call.1} parent=11 // pred_fallthru
          _
        // Predicated region
        $region61: #{tpu_custom_call.1} parent=11 // pred_check
          %p514 = pneg %p353
        $region62: #{tpu_custom_call.1} parent=11 // pred_check_branch
          %516 = sbr.rel (%p514) target = $region64
        $region63: #{tpu_custom_call.1} parent=11 // pred_region
          _
        $region64: #{tpu_custom_call.1} parent=11 // pred_fallthru
          _
        // Predicated region
        $region65: #{tpu_custom_call.1} parent=11 // pred_check
          %p517 = pneg %p374
        $region66: #{tpu_custom_call.1} parent=11 // pred_check_branch
          %519 = sbr.rel (%p517) target = $region68
        $region67: #{tpu_custom_call.1} parent=11 // pred_region
          _
        $region68: #{tpu_custom_call.1} parent=11 // pred_fallthru
          _
        // Predicated region
        $region69: #{tpu_custom_call.1} parent=11 // pred_check
          %p520 = pneg %p395
        $region70: #{tpu_custom_call.1} parent=11 // pred_check_branch
          %522 = sbr.rel (%p520) target = $region72
        $region71: #{tpu_custom_call.1} parent=11 // pred_region
          _
        $region72: #{tpu_custom_call.1} parent=11 // pred_fallthru
          _
        // Predicated region
        $region73: #{tpu_custom_call.1} parent=11 // pred_check
          %p523 = pneg %p416
        $region74: #{tpu_custom_call.1} parent=11 // pred_check_branch
          %525 = sbr.rel (%p523) target = $region76
        $region75: #{tpu_custom_call.1} parent=11 // pred_region
          _
        $region76: #{tpu_custom_call.1} parent=11 // pred_fallthru
          _
        // Predicated region
        $region77: #{tpu_custom_call.1} parent=11 // pred_check
          %p526 = pneg %p437
        $region78: #{tpu_custom_call.1} parent=11 // pred_check_branch
          %528 = sbr.rel (%p526) target = $region80
        $region79: #{tpu_custom_call.1} parent=11 // pred_region
          _
        $region80: #{tpu_custom_call.1} parent=11 // pred_fallthru
          _
      $region12: #{tpu_custom_call.1} parent=5 // pred_fallthru
        _
      %p529 = scmp.lt.s32.totalorder %s28, 2
      // Predicated region
      $region81: #{tpu_custom_call.1} parent=5 // pred_check
        %p530 = pneg %p529
      $region82: #{tpu_custom_call.1} parent=5 // pred_check_branch
        %532 = sbr.rel (%p530) target = $region84
      $region83: #{tpu_custom_call.1} parent=5 // pred_region
        // Predicated region
        $region85: #{tpu_custom_call.1} parent=83 // pred_check
          %p533 = pneg %p48
        $region86: #{tpu_custom_call.1} parent=83 // pred_check_branch
          %535 = sbr.rel (%p533) target = $region88
        $region87: #{tpu_custom_call.1} parent=83 // pred_region
          %p536 = scmp.lt.s32.totalorder %s28, 1
          %s537 = scalar_select %p536, %s28, 1
          %s538 = smul.addr %s537, 8
          %s539 = scalar_lea.vmem %s0, %s538
        $region88: #{tpu_custom_call.1} parent=83 // pred_fallthru
          _
        // Predicated region
        $region89: #{tpu_custom_call.1} parent=83 // pred_check
          %p540 = pneg %p74
        $region90: #{tpu_custom_call.1} parent=83 // pred_check_branch
          %542 = sbr.rel (%p540) target = $region92
        $region91: #{tpu_custom_call.1} parent=83 // pred_region
          %p543 = scmp.lt.s32.totalorder %s28, 1
          %s544 = scalar_select %p543, %s28, 1
          %s545 = smul.addr %s544, 8
          %s546 = scalar_lea.vmem %s1, %s545
        $region92: #{tpu_custom_call.1} parent=83 // pred_fallthru
          _
      $region84: #{tpu_custom_call.1} parent=5 // pred_fallthru
        _
      %p547 = scmp.le.s32.totalorder 1, %s28
      %p548 = scmp.lt.s32.totalorder %s28, 3
      %p549 = pnand %p547, %p548
      %p550 = pneg %p549
      // Predicated region
      $region93: #{tpu_custom_call.1} parent=5 // pred_check
        _
      $region94: #{tpu_custom_call.1} parent=5 // pred_check_branch
        %552 = sbr.rel (%p549) target = $region96
      $region95: #{tpu_custom_call.1} parent=5 // pred_region
        %s553 = ssub.s32 %s28, 1
        %p554 = scmp.lt.s32.totalorder %s33, 1
        %s555 = scalar_select %p554, %s33, 1
        %s556 = smul.addr %s555, 8
        %s557 = scalar_lea.vmem %s0, %s556
        %p558 = pneg %p54
        %p559 = pneg %p51
        %p560 = scmp.lt.s32.totalorder %s33, 1
        %s561 = scalar_select %p560, %s33, 1
        %s562 = smul.addr %s561, 8
        %s563 = scalar_lea.vmem %s1, %s562
        %p564 = pneg %p80
        %p565 = pneg %p77
        %p566 = pneg %p101
        %p567 = pneg %p98
        %p568 = pneg %p122
        %p569 = pneg %p119
        %p570 = pneg %p143
        %p571 = pneg %p140
        %p572 = pneg %p164
        %p573 = pneg %p161
        %p574 = pneg %p185
        %p575 = pneg %p182
        %p576 = pneg %p206
        %p577 = pneg %p203
        %p578 = pneg %p227
        %p579 = pneg %p224
        %p580 = pneg %p248
        %p581 = pneg %p245
        %p582 = pneg %p269
        %p583 = pneg %p266
        %p584 = pneg %p290
        %p585 = pneg %p287
        %p586 = pneg %p311
        %p587 = pneg %p308
        %p588 = pneg %p332
        %p589 = pneg %p329
        %p590 = pneg %p353
        %p591 = pneg %p350
        %p592 = pneg %p374
        %p593 = pneg %p371
        %p594 = pneg %p395
        %p595 = pneg %p392
        %p596 = pneg %p416
        %p597 = pneg %p413
        %p598 = pneg %p437
        %p599 = pneg %p434
        %p600 = pneg %p463
        %p601 = pneg %p460
        %s602 = sand.u32 %s450, 1
        %s603 = scalar_lea.sflag [#allocation3], %s602
        %s604 = sand.u32 %s450, 1
        %s605 = smul.addr %s604, 8
        %s606 = scalar_lea.vmem [#allocation2], %s605
        %p607 = scmp.lt.s32.totalorder %s33, 1
        %s608 = scalar_select %p607, %s33, 1
        %s609 = smul.addr %s608, 8
        %s610 = scalar_lea.vmem %s0, %s609
        %p611 = scmp.lt.s32.totalorder %s33, 1
        %s612 = scalar_select %p611, %s33, 1
        %s613 = smul.addr %s612, 8
        %s614 = scalar_lea.vmem %s1, %s613
        %v615 = vld [vmem:[%s610] sm:$0xff]
        %v616 = vld [vmem:[%s614] sm:$0xff]
        %vm617 = vcmp.ne.s32.totalorder %v616, 0
        %v618 = vsel %vm617, -1e+30, 0.0
        %v619 = vld [vmem:[%s2] sm:$0xff]
        %v620 = vld [vmem:[%s2 + $0x8] sm:$0xff]
        %v621 = vld [vmem:[%s2 + $0x10] sm:$0xff]
        %v622 = vld [vmem:[%s2 + $0x18] sm:$0xff]
        %v623 = vld [vmem:[%s2 + $0x20] sm:$0xff]
        %v624 = vld [vmem:[%s2 + $0x28] sm:$0xff]
        %v625 = vld [vmem:[%s2 + $0x30] sm:$0xff]
        %v626 = vld [vmem:[%s2 + $0x38] sm:$0xff]
        %v627 = vld [vmem:[%s2 + $0x40] sm:$0xff]
        %v628 = vld [vmem:[%s2 + $0x48] sm:$0xff]
        %v629 = vld [vmem:[%s2 + $0x50] sm:$0xff]
        %v630 = vld [vmem:[%s2 + $0x58] sm:$0xff]
        %v631 = vld [vmem:[%s2 + $0x60] sm:$0xff]
        %v632 = vld [vmem:[%s2 + $0x68] sm:$0xff]
        %v633 = vld [vmem:[%s2 + $0x70] sm:$0xff]
        %v634 = vld [vmem:[%s2 + $0x78] sm:$0xff]
        %v635 = vld [vmem:[%s3] sm:$0x1]
        %v636 = vld [vmem:[%s3 + $0x1] sm:$0x1]
        %v637 = vld [vmem:[%s3 + $0x2] sm:$0x1]
        %v638 = vld [vmem:[%s3 + $0x3] sm:$0x1]
        %v643 = vperm.slane %v635, 0
        %v644 = vperm.slane %v636, 0
        %v645 = vperm.slane %v637, 0
        %v646 = vperm.slane %v638, 0
        %vm651 = vcmask 261120
        %v653 = vsel %vm651, %v615, 0
        %655 = vmatpush.msra.mxu0 0.0
        %656 = vmatpush.msra.mxu0 0.0
        %657 = vmatpush.msra.mxu0 0.0
        %658 = vmatpush.msra.mxu0 0.0
        %659 = vmatpush.msra.mxu0 0.0
        %660 = vmatpush.msra.mxu0 0.0
        %661 = vmatpush.msra.mxu0 0.0
        %662 = vmatpush.msra.mxu0 0.0
        %663 = vmatpush.msra.mxu0 0.0
        %664 = vmatpush.msra.mxu0 0.0
        %665 = vmatpush.msra.mxu0 0.0
        %666 = vmatpush.msra.mxu0 0.0
        %667 = vmatpush.msra.mxu0 %v622
        %668 = vmatpush.msra.mxu0 %v621
        %669 = vmatpush.msra.mxu0 %v620
        %670 = vmatpush.msra.mxu0 %v619
        %671 = vmatmul.f32.gmra.mxu0 %v653
        %v672 = vpop.f32.mrf.mxu0
        %v673 = vadd.f32 %v643, %v672
        %674 = vdwg.mxu0
        %675 = vmatpush.msra.mxu0 0.0
        %676 = vmatpush.msra.mxu0 0.0
        %677 = vmatpush.msra.mxu0 0.0
        %678 = vmatpush.msra.mxu0 0.0
        %679 = vmatpush.msra.mxu0 0.0
        %680 = vmatpush.msra.mxu0 0.0
        %681 = vmatpush.msra.mxu0 0.0
        %682 = vmatpush.msra.mxu0 0.0
        %683 = vmatpush.msra.mxu0 0.0
        %684 = vmatpush.msra.mxu0 0.0
        %685 = vmatpush.msra.mxu0 0.0
        %686 = vmatpush.msra.mxu0 0.0
        %687 = vmatpush.msra.mxu0 %v626
        %688 = vmatpush.msra.mxu0 %v625
        %689 = vmatpush.msra.mxu0 %v624
        %690 = vmatpush.msra.mxu0 %v623
        %691 = vmatmul.f32.gmra.mxu0 %v653
        %v692 = vpop.f32.mrf.mxu0
        %v693 = vadd.f32 %v644, %v692
        %694 = vdwg.mxu0
        %695 = vmatpush.msra.mxu0 0.0
        %696 = vmatpush.msra.mxu0 0.0
        %697 = vmatpush.msra.mxu0 0.0
        %698 = vmatpush.msra.mxu0 0.0
        %699 = vmatpush.msra.mxu0 0.0
        %700 = vmatpush.msra.mxu0 0.0
        %701 = vmatpush.msra.mxu0 0.0
        %702 = vmatpush.msra.mxu0 0.0
        %703 = vmatpush.msra.mxu0 0.0
        %704 = vmatpush.msra.mxu0 0.0
        %705 = vmatpush.msra.mxu0 0.0
        %706 = vmatpush.msra.mxu0 0.0
        %707 = vmatpush.msra.mxu0 %v630
        %708 = vmatpush.msra.mxu0 %v629
        %709 = vmatpush.msra.mxu0 %v628
        %710 = vmatpush.msra.mxu0 %v627
        %711 = vmatmul.f32.gmra.mxu0 %v653
        %v712 = vpop.f32.mrf.mxu0
        %v713 = vadd.f32 %v645, %v712
        %714 = vdwg.mxu0
        %715 = vmatpush.msra.mxu0 0.0
        %716 = vmatpush.msra.mxu0 0.0
        %717 = vmatpush.msra.mxu0 0.0
        %718 = vmatpush.msra.mxu0 0.0
        %719 = vmatpush.msra.mxu0 0.0
        %720 = vmatpush.msra.mxu0 0.0
        %721 = vmatpush.msra.mxu0 0.0
        %722 = vmatpush.msra.mxu0 0.0
        %723 = vmatpush.msra.mxu0 0.0
        %724 = vmatpush.msra.mxu0 0.0
        %725 = vmatpush.msra.mxu0 0.0
        %726 = vmatpush.msra.mxu0 0.0
        %727 = vmatpush.msra.mxu0 %v634
        %728 = vmatpush.msra.mxu0 %v633
        %729 = vmatpush.msra.mxu0 %v632
        %730 = vmatpush.msra.mxu0 %v631
        %731 = vmatmul.f32.gmra.mxu0 %v653
        %v732 = vpop.f32.mrf.mxu0
        %v733 = vadd.f32 %v646, %v732
        %734 = vdwg.mxu0
        %v735 = vld [vmem:[%s4] sm:$0xff]
        %v736 = vld [vmem:[%s4 + $0x8] sm:$0xff]
        %v737 = vld [vmem:[%s4 + $0x10] sm:$0xff]
        %v738 = vld [vmem:[%s4 + $0x18] sm:$0xff]
        %v739 = vld [vmem:[%s4 + $0x20] sm:$0xff]
        %v740 = vld [vmem:[%s4 + $0x28] sm:$0xff]
        %v741 = vld [vmem:[%s4 + $0x30] sm:$0xff]
        %v742 = vld [vmem:[%s4 + $0x38] sm:$0xff]
        %v743 = vld [vmem:[%s4 + $0x40] sm:$0xff]
        %v744 = vld [vmem:[%s4 + $0x48] sm:$0xff]
        %v745 = vld [vmem:[%s4 + $0x50] sm:$0xff]
        %v746 = vld [vmem:[%s4 + $0x58] sm:$0xff]
        %v747 = vld [vmem:[%s4 + $0x60] sm:$0xff]
        %v748 = vld [vmem:[%s4 + $0x68] sm:$0xff]
        %v749 = vld [vmem:[%s4 + $0x70] sm:$0xff]
        %v750 = vld [vmem:[%s4 + $0x78] sm:$0xff]
        %v751 = vld [vmem:[%s5] sm:$0x1]
        %v752 = vld [vmem:[%s5 + $0x1] sm:$0x1]
        %v753 = vld [vmem:[%s5 + $0x2] sm:$0x1]
        %v754 = vld [vmem:[%s5 + $0x3] sm:$0x1]
        %v759 = vperm.slane %v751, 0
        %v760 = vperm.slane %v752, 0
        %v761 = vperm.slane %v753, 0
        %v762 = vperm.slane %v754, 0
        %767 = vmatpush.msra.mxu0 0.0
        %768 = vmatpush.msra.mxu0 0.0
        %769 = vmatpush.msra.mxu0 0.0
        %770 = vmatpush.msra.mxu0 0.0
        %771 = vmatpush.msra.mxu0 0.0
        %772 = vmatpush.msra.mxu0 0.0
        %773 = vmatpush.msra.mxu0 0.0
        %774 = vmatpush.msra.mxu0 0.0
        %775 = vmatpush.msra.mxu0 0.0
        %776 = vmatpush.msra.mxu0 0.0
        %777 = vmatpush.msra.mxu0 0.0
        %778 = vmatpush.msra.mxu0 0.0
        %779 = vmatpush.msra.mxu0 %v738
        %780 = vmatpush.msra.mxu0 %v737
        %781 = vmatpush.msra.mxu0 %v736
        %782 = vmatpush.msra.mxu0 %v735
        %783 = vmatmul.f32.gmra.mxu0 %v653
        %v784 = vpop.f32.mrf.mxu0
        %v785 = vadd.f32 %v759, %v784
        %786 = vdwg.mxu0
        %787 = vmatpush.msra.mxu0 0.0
        %788 = vmatpush.msra.mxu0 0.0
        %789 = vmatpush.msra.mxu0 0.0
        %790 = vmatpush.msra.mxu0 0.0
        %791 = vmatpush.msra.mxu0 0.0
        %792 = vmatpush.msra.mxu0 0.0
        %793 = vmatpush.msra.mxu0 0.0
        %794 = vmatpush.msra.mxu0 0.0
        %795 = vmatpush.msra.mxu0 0.0
        %796 = vmatpush.msra.mxu0 0.0
        %797 = vmatpush.msra.mxu0 0.0
        %798 = vmatpush.msra.mxu0 0.0
        %799 = vmatpush.msra.mxu0 %v742
        %800 = vmatpush.msra.mxu0 %v741
        %801 = vmatpush.msra.mxu0 %v740
        %802 = vmatpush.msra.mxu0 %v739
        %803 = vmatmul.f32.gmra.mxu0 %v653
        %v804 = vpop.f32.mrf.mxu0
        %v805 = vadd.f32 %v760, %v804
        %806 = vdwg.mxu0
        %807 = vmatpush.msra.mxu0 0.0
        %808 = vmatpush.msra.mxu0 0.0
        %809 = vmatpush.msra.mxu0 0.0
        %810 = vmatpush.msra.mxu0 0.0
        %811 = vmatpush.msra.mxu0 0.0
        %812 = vmatpush.msra.mxu0 0.0
        %813 = vmatpush.msra.mxu0 0.0
        %814 = vmatpush.msra.mxu0 0.0
        %815 = vmatpush.msra.mxu0 0.0
        %816 = vmatpush.msra.mxu0 0.0
        %817 = vmatpush.msra.mxu0 0.0
        %818 = vmatpush.msra.mxu0 0.0
        %819 = vmatpush.msra.mxu0 %v746
        %820 = vmatpush.msra.mxu0 %v745
        %821 = vmatpush.msra.mxu0 %v744
        %822 = vmatpush.msra.mxu0 %v743
        %823 = vmatmul.f32.gmra.mxu0 %v653
        %v824 = vpop.f32.mrf.mxu0
        %v825 = vadd.f32 %v761, %v824
        %826 = vdwg.mxu0
        %827 = vmatpush.msra.mxu0 0.0
        %828 = vmatpush.msra.mxu0 0.0
        %829 = vmatpush.msra.mxu0 0.0
        %830 = vmatpush.msra.mxu0 0.0
        %831 = vmatpush.msra.mxu0 0.0
        %832 = vmatpush.msra.mxu0 0.0
        %833 = vmatpush.msra.mxu0 0.0
        %834 = vmatpush.msra.mxu0 0.0
        %835 = vmatpush.msra.mxu0 0.0
        %836 = vmatpush.msra.mxu0 0.0
        %837 = vmatpush.msra.mxu0 0.0
        %838 = vmatpush.msra.mxu0 0.0
        %839 = vmatpush.msra.mxu0 %v750
        %840 = vmatpush.msra.mxu0 %v749
        %841 = vmatpush.msra.mxu0 %v748
        %842 = vmatpush.msra.mxu0 %v747
        %843 = vmatmul.f32.gmra.mxu0 %v653
        %v844 = vpop.f32.mrf.mxu0
        %v845 = vadd.f32 %v762, %v844
        %846 = vdwg.mxu0
        %v847 = vld [vmem:[%s6] sm:$0xff]
        %v848 = vld [vmem:[%s6 + $0x8] sm:$0xff]
        %v849 = vld [vmem:[%s6 + $0x10] sm:$0xff]
        %v850 = vld [vmem:[%s6 + $0x18] sm:$0xff]
        %v851 = vld [vmem:[%s6 + $0x20] sm:$0xff]
        %v852 = vld [vmem:[%s6 + $0x28] sm:$0xff]
        %v853 = vld [vmem:[%s6 + $0x30] sm:$0xff]
        %v854 = vld [vmem:[%s6 + $0x38] sm:$0xff]
        %v855 = vld [vmem:[%s6 + $0x40] sm:$0xff]
        %v856 = vld [vmem:[%s6 + $0x48] sm:$0xff]
        %v857 = vld [vmem:[%s6 + $0x50] sm:$0xff]
        %v858 = vld [vmem:[%s6 + $0x58] sm:$0xff]
        %v859 = vld [vmem:[%s6 + $0x60] sm:$0xff]
        %v860 = vld [vmem:[%s6 + $0x68] sm:$0xff]
        %v861 = vld [vmem:[%s6 + $0x70] sm:$0xff]
        %v862 = vld [vmem:[%s6 + $0x78] sm:$0xff]
        %v863 = vld [vmem:[%s7] sm:$0x1]
        %v864 = vld [vmem:[%s7 + $0x1] sm:$0x1]
        %v865 = vld [vmem:[%s7 + $0x2] sm:$0x1]
        %v866 = vld [vmem:[%s7 + $0x3] sm:$0x1]
        %v871 = vperm.slane %v863, 0
        %v872 = vperm.slane %v864, 0
        %v873 = vperm.slane %v865, 0
        %v874 = vperm.slane %v866, 0
        %879 = vmatpush.msra.mxu0 0.0
        %880 = vmatpush.msra.mxu0 0.0
        %881 = vmatpush.msra.mxu0 0.0
        %882 = vmatpush.msra.mxu0 0.0
        %883 = vmatpush.msra.mxu0 0.0
        %884 = vmatpush.msra.mxu0 0.0
        %885 = vmatpush.msra.mxu0 0.0
        %886 = vmatpush.msra.mxu0 0.0
        %887 = vmatpush.msra.mxu0 0.0
        %888 = vmatpush.msra.mxu0 0.0
        %889 = vmatpush.msra.mxu0 0.0
        %890 = vmatpush.msra.mxu0 0.0
        %891 = vmatpush.msra.mxu0 %v850
        %892 = vmatpush.msra.mxu0 %v849
        %893 = vmatpush.msra.mxu0 %v848
        %894 = vmatpush.msra.mxu0 %v847
        %895 = vmatmul.f32.gmra.mxu0 %v653
        %v896 = vpop.f32.mrf.mxu0
        %v897 = vadd.f32 %v871, %v896
        %898 = vdwg.mxu0
        %899 = vmatpush.msra.mxu0 0.0
        %900 = vmatpush.msra.mxu0 0.0
        %901 = vmatpush.msra.mxu0 0.0
        %902 = vmatpush.msra.mxu0 0.0
        %903 = vmatpush.msra.mxu0 0.0
        %904 = vmatpush.msra.mxu0 0.0
        %905 = vmatpush.msra.mxu0 0.0
        %906 = vmatpush.msra.mxu0 0.0
        %907 = vmatpush.msra.mxu0 0.0
        %908 = vmatpush.msra.mxu0 0.0
        %909 = vmatpush.msra.mxu0 0.0
        %910 = vmatpush.msra.mxu0 0.0
        %911 = vmatpush.msra.mxu0 %v854
        %912 = vmatpush.msra.mxu0 %v853
        %913 = vmatpush.msra.mxu0 %v852
        %914 = vmatpush.msra.mxu0 %v851
        %915 = vmatmul.f32.gmra.mxu0 %v653
        %v916 = vpop.f32.mrf.mxu0
        %v917 = vadd.f32 %v872, %v916
        %918 = vdwg.mxu0
        %919 = vmatpush.msra.mxu0 0.0
        %920 = vmatpush.msra.mxu0 0.0
        %921 = vmatpush.msra.mxu0 0.0
        %922 = vmatpush.msra.mxu0 0.0
        %923 = vmatpush.msra.mxu0 0.0
        %924 = vmatpush.msra.mxu0 0.0
        %925 = vmatpush.msra.mxu0 0.0
        %926 = vmatpush.msra.mxu0 0.0
        %927 = vmatpush.msra.mxu0 0.0
        %928 = vmatpush.msra.mxu0 0.0
        %929 = vmatpush.msra.mxu0 0.0
        %930 = vmatpush.msra.mxu0 0.0
        %931 = vmatpush.msra.mxu0 %v858
        %932 = vmatpush.msra.mxu0 %v857
        %933 = vmatpush.msra.mxu0 %v856
        %934 = vmatpush.msra.mxu0 %v855
        %935 = vmatmul.f32.gmra.mxu0 %v653
        %v936 = vpop.f32.mrf.mxu0
        %v937 = vadd.f32 %v873, %v936
        %938 = vdwg.mxu0
        %939 = vmatpush.msra.mxu0 0.0
        %940 = vmatpush.msra.mxu0 0.0
        %941 = vmatpush.msra.mxu0 0.0
        %942 = vmatpush.msra.mxu0 0.0
        %943 = vmatpush.msra.mxu0 0.0
        %944 = vmatpush.msra.mxu0 0.0
        %945 = vmatpush.msra.mxu0 0.0
        %946 = vmatpush.msra.mxu0 0.0
        %947 = vmatpush.msra.mxu0 0.0
        %948 = vmatpush.msra.mxu0 0.0
        %949 = vmatpush.msra.mxu0 0.0
        %950 = vmatpush.msra.mxu0 0.0
        %951 = vmatpush.msra.mxu0 %v862
        %952 = vmatpush.msra.mxu0 %v861
        %953 = vmatpush.msra.mxu0 %v860
        %954 = vmatpush.msra.mxu0 %v859
        %955 = vmatmul.f32.gmra.mxu0 %v653
        %v956 = vpop.f32.mrf.mxu0
        %v957 = vadd.f32 %v874, %v956
        %958 = vdwg.mxu0
        %vm959 = vcmask 64512
        %v961 = vsel %vm959, %v673, 0
        %v964 = vsel %vm959, %v785, 0
        %966 = vmatpush.xpose.msra.mxu0 0.0
        %967 = vmatpush.xpose.msra.mxu0 0.0
        %968 = vmatpush.xpose.msra.mxu0 0.0
        %969 = vmatpush.xpose.msra.mxu0 0.0
        %970 = vmatpush.xpose.msra.mxu0 0.0
        %971 = vmatpush.xpose.msra.mxu0 0.0
        %972 = vmatpush.xpose.msra.mxu0 0.0
        %973 = vmatpush.xpose.msra.mxu0 0.0
        %974 = vmatpush.xpose.msra.mxu0 0.0
        %975 = vmatpush.xpose.msra.mxu0 0.0
        %976 = vmatpush.xpose.msra.mxu0 0.0
        %977 = vmatpush.xpose.msra.mxu0 0.0
        %978 = vmatpush.xpose.msra.mxu0 0.0
        %979 = vmatpush.xpose.msra.mxu0 0.0
        %980 = vmatpush.xpose.msra.mxu0 0.0
        %981 = vmatpush.xpose.msra.mxu0 %v964
        %982 = vmatmul.f32.gmra.mxu0 %v961
        %v983 = vpop.f32.mrf.mxu0
        %v984 = vadd.f32 0.0, %v983
        %985 = vdwg.mxu0
        %v987 = vsel %vm959, %v693, 0
        %v990 = vsel %vm959, %v805, 0
        %992 = vmatpush.xpose.msra.mxu0 0.0
        %993 = vmatpush.xpose.msra.mxu0 0.0
        %994 = vmatpush.xpose.msra.mxu0 0.0
        %995 = vmatpush.xpose.msra.mxu0 0.0
        %996 = vmatpush.xpose.msra.mxu0 0.0
        %997 = vmatpush.xpose.msra.mxu0 0.0
        %998 = vmatpush.xpose.msra.mxu0 0.0
        %999 = vmatpush.xpose.msra.mxu0 0.0
        %1000 = vmatpush.xpose.msra.mxu0 0.0
        %1001 = vmatpush.xpose.msra.mxu0 0.0
        %1002 = vmatpush.xpose.msra.mxu0 0.0
        %1003 = vmatpush.xpose.msra.mxu0 0.0
        %1004 = vmatpush.xpose.msra.mxu0 0.0
        %1005 = vmatpush.xpose.msra.mxu0 0.0
        %1006 = vmatpush.xpose.msra.mxu0 0.0
        %1007 = vmatpush.xpose.msra.mxu0 %v990
        %1008 = vmatmul.f32.gmra.mxu0 %v987
        %v1009 = vpop.f32.mrf.mxu0
        %v1010 = vadd.f32 0.0, %v1009
        %1011 = vdwg.mxu0
        %v1013 = vsel %vm959, %v713, 0
        %v1016 = vsel %vm959, %v825, 0
        %1018 = vmatpush.xpose.msra.mxu0 0.0
        %1019 = vmatpush.xpose.msra.mxu0 0.0
        %1020 = vmatpush.xpose.msra.mxu0 0.0
        %1021 = vmatpush.xpose.msra.mxu0 0.0
        %1022 = vmatpush.xpose.msra.mxu0 0.0
        %1023 = vmatpush.xpose.msra.mxu0 0.0
        %1024 = vmatpush.xpose.msra.mxu0 0.0
        %1025 = vmatpush.xpose.msra.mxu0 0.0
        %1026 = vmatpush.xpose.msra.mxu0 0.0
        %1027 = vmatpush.xpose.msra.mxu0 0.0
        %1028 = vmatpush.xpose.msra.mxu0 0.0
        %1029 = vmatpush.xpose.msra.mxu0 0.0
        %1030 = vmatpush.xpose.msra.mxu0 0.0
        %1031 = vmatpush.xpose.msra.mxu0 0.0
        %1032 = vmatpush.xpose.msra.mxu0 0.0
        %1033 = vmatpush.xpose.msra.mxu0 %v1016
        %1034 = vmatmul.f32.gmra.mxu0 %v1013
        %v1035 = vpop.f32.mrf.mxu0
        %v1036 = vadd.f32 0.0, %v1035
        %1037 = vdwg.mxu0
        %v1039 = vsel %vm959, %v733, 0
        %v1042 = vsel %vm959, %v845, 0
        %1044 = vmatpush.xpose.msra.mxu0 0.0
        %1045 = vmatpush.xpose.msra.mxu0 0.0
        %1046 = vmatpush.xpose.msra.mxu0 0.0
        %1047 = vmatpush.xpose.msra.mxu0 0.0
        %1048 = vmatpush.xpose.msra.mxu0 0.0
        %1049 = vmatpush.xpose.msra.mxu0 0.0
        %1050 = vmatpush.xpose.msra.mxu0 0.0
        %1051 = vmatpush.xpose.msra.mxu0 0.0
        %1052 = vmatpush.xpose.msra.mxu0 0.0
        %1053 = vmatpush.xpose.msra.mxu0 0.0
        %1054 = vmatpush.xpose.msra.mxu0 0.0
        %1055 = vmatpush.xpose.msra.mxu0 0.0
        %1056 = vmatpush.xpose.msra.mxu0 0.0
        %1057 = vmatpush.xpose.msra.mxu0 0.0
        %1058 = vmatpush.xpose.msra.mxu0 0.0
        %1059 = vmatpush.xpose.msra.mxu0 %v1042
        %1060 = vmatmul.f32.gmra.mxu0 %v1039
        %v1061 = vpop.f32.mrf.mxu0
        %v1062 = vadd.f32 0.0, %v1061
        %1063 = vdwg.mxu0
        %v1064 = vmul.f32 %v984, 0.35355338
        %v1065 = vmul.f32 %v1010, 0.35355338
        %v1066 = vmul.f32 %v1036, 0.35355338
        %v1067 = vmul.f32 %v1062, 0.35355338
        %v1068 = vadd.f32 %v1064, %v618
        %v1069 = vadd.f32 %v1065, %v618
        %v1070 = vadd.f32 %v1066, %v618
        %v1071 = vadd.f32 %v1067, %v618
        %v1072 = vsel %vm959, %v1068, -inf
        %1073 = vmax.xlane.f32.xlu0 %v1072
        %v1074 = vpop.xlane.xlu0 %1073
        %v1075 = vsel %vm959, %v1069, -inf
        %1076 = vmax.xlane.f32.xlu0 %v1075
        %v1077 = vpop.xlane.xlu0 %1076
        %v1078 = vsel %vm959, %v1070, -inf
        %1079 = vmax.xlane.f32.xlu0 %v1078
        %v1080 = vpop.xlane.xlu0 %1079
        %v1081 = vsel %vm959, %v1071, -inf
        %1082 = vmax.xlane.f32.xlu0 %v1081
        %v1083 = vpop.xlane.xlu0 %1082
        %v1084 = vsub.f32 %v1068, %v1074
        %v1085 = vsub.f32 %v1069, %v1077
        %v1086 = vsub.f32 %v1070, %v1080
        %v1087 = vsub.f32 %v1071, %v1083
        %v1088 = vmul.f32 %v1084, 1.442695
        %v1089 = vpow.pop %v1088
        %v1090 = vmul.f32 %v1085, 1.442695
        %v1091 = vpow.pop %v1090
        %v1092 = vmul.f32 %v1086, 1.442695
        %v1093 = vpow.pop %v1092
        %v1094 = vmul.f32 %v1087, 1.442695
        %v1095 = vpow.pop %v1094
        %v1096 = vsel %vm959, %v1089, 0.0
        %1097 = vadd.xlane.f32.xlu0 %v1096
        %v1098 = vpop.xlane.xlu0 %1097
        %v1099 = vsel %vm959, %v1091, 0.0
        %1100 = vadd.xlane.f32.xlu0 %v1099
        %v1101 = vpop.xlane.xlu0 %1100
        %v1102 = vsel %vm959, %v1093, 0.0
        %1103 = vadd.xlane.f32.xlu0 %v1102
        %v1104 = vpop.xlane.xlu0 %1103
        %v1105 = vsel %vm959, %v1095, 0.0
        %1106 = vadd.xlane.f32.xlu0 %v1105
        %v1107 = vpop.xlane.xlu0 %1106
        %v1108 = vrcp.pop %v1098
        %v1109 = vrcp.pop %v1101
        %v1110 = vrcp.pop %v1104
        %v1111 = vrcp.pop %v1107
        %v1112 = vmul.f32 %v1089, %v1108
        %v1113 = vmul.f32 %v1091, %v1109
        %v1114 = vmul.f32 %v1093, %v1110
        %v1115 = vmul.f32 %v1095, %v1111
        %v1117 = vsel %vm959, %v1112, 0
        %1119 = vmatpush.msra.mxu0 0.0
        %1120 = vmatpush.msra.mxu0 0.0
        %1121 = vmatpush.msra.mxu0 0.0
        %1122 = vmatpush.msra.mxu0 0.0
        %1123 = vmatpush.msra.mxu0 0.0
        %1124 = vmatpush.msra.mxu0 0.0
        %1125 = vmatpush.msra.mxu0 0.0
        %1126 = vmatpush.msra.mxu0 0.0
        %1127 = vmatpush.msra.mxu0 0.0
        %1128 = vmatpush.msra.mxu0 0.0
        %1129 = vmatpush.msra.mxu0 0.0
        %1130 = vmatpush.msra.mxu0 0.0
        %1131 = vmatpush.msra.mxu0 0.0
        %1132 = vmatpush.msra.mxu0 0.0
        %1133 = vmatpush.msra.mxu0 0.0
        %1134 = vmatpush.msra.mxu0 %v897
        %1135 = vmatmul.f32.gmra.mxu0 %v1117
        %v1136 = vpop.f32.mrf.mxu0
        %v1137 = vadd.f32 0.0, %v1136
        %1138 = vdwg.mxu0
        %v1140 = vsel %vm959, %v1113, 0
        %1142 = vmatpush.msra.mxu0 0.0
        %1143 = vmatpush.msra.mxu0 0.0
        %1144 = vmatpush.msra.mxu0 0.0
        %1145 = vmatpush.msra.mxu0 0.0
        %1146 = vmatpush.msra.mxu0 0.0
        %1147 = vmatpush.msra.mxu0 0.0
        %1148 = vmatpush.msra.mxu0 0.0
        %1149 = vmatpush.msra.mxu0 0.0
        %1150 = vmatpush.msra.mxu0 0.0
        %1151 = vmatpush.msra.mxu0 0.0
        %1152 = vmatpush.msra.mxu0 0.0
        %1153 = vmatpush.msra.mxu0 0.0
        %1154 = vmatpush.msra.mxu0 0.0
        %1155 = vmatpush.msra.mxu0 0.0
        %1156 = vmatpush.msra.mxu0 0.0
        %1157 = vmatpush.msra.mxu0 %v917
        %1158 = vmatmul.f32.gmra.mxu0 %v1140
        %v1159 = vpop.f32.mrf.mxu0
        %v1160 = vadd.f32 0.0, %v1159
        %1161 = vdwg.mxu0
        %v1163 = vsel %vm959, %v1114, 0
        %1165 = vmatpush.msra.mxu0 0.0
        %1166 = vmatpush.msra.mxu0 0.0
        %1167 = vmatpush.msra.mxu0 0.0
        %1168 = vmatpush.msra.mxu0 0.0
        %1169 = vmatpush.msra.mxu0 0.0
        %1170 = vmatpush.msra.mxu0 0.0
        %1171 = vmatpush.msra.mxu0 0.0
        %1172 = vmatpush.msra.mxu0 0.0
        %1173 = vmatpush.msra.mxu0 0.0
        %1174 = vmatpush.msra.mxu0 0.0
        %1175 = vmatpush.msra.mxu0 0.0
        %1176 = vmatpush.msra.mxu0 0.0
        %1177 = vmatpush.msra.mxu0 0.0
        %1178 = vmatpush.msra.mxu0 0.0
        %1179 = vmatpush.msra.mxu0 0.0
        %1180 = vmatpush.msra.mxu0 %v937
        %1181 = vmatmul.f32.gmra.mxu0 %v1163
        %v1182 = vpop.f32.mrf.mxu0
        %v1183 = vadd.f32 0.0, %v1182
        %1184 = vdwg.mxu0
        %v1186 = vsel %vm959, %v1115, 0
        %1188 = vmatpush.msra.mxu0 0.0
        %1189 = vmatpush.msra.mxu0 0.0
        %1190 = vmatpush.msra.mxu0 0.0
        %1191 = vmatpush.msra.mxu0 0.0
        %1192 = vmatpush.msra.mxu0 0.0
        %1193 = vmatpush.msra.mxu0 0.0
        %1194 = vmatpush.msra.mxu0 0.0
        %1195 = vmatpush.msra.mxu0 0.0
        %1196 = vmatpush.msra.mxu0 0.0
        %1197 = vmatpush.msra.mxu0 0.0
        %1198 = vmatpush.msra.mxu0 0.0
        %1199 = vmatpush.msra.mxu0 0.0
        %1200 = vmatpush.msra.mxu0 0.0
        %1201 = vmatpush.msra.mxu0 0.0
        %1202 = vmatpush.msra.mxu0 0.0
        %1203 = vmatpush.msra.mxu0 %v957
        %1204 = vmatmul.f32.gmra.mxu0 %v1186
        %v1205 = vpop.f32.mrf.mxu0
        %v1206 = vadd.f32 0.0, %v1205
        %1207 = vdwg.mxu0
        %v1208 = vld [vmem:[%s8] sm:$0xff]
        %v1209 = vld [vmem:[%s8 + $0x8] sm:$0xff]
        %v1210 = vld [vmem:[%s8 + $0x10] sm:$0xff]
        %v1211 = vld [vmem:[%s8 + $0x18] sm:$0xff]
        %v1213 = vsel %vm959, %v1137, 0
        %1215 = vmatpush.msra.mxu0 0.0
        %1216 = vmatpush.msra.mxu0 0.0
        %1217 = vmatpush.msra.mxu0 0.0
        %1218 = vmatpush.msra.mxu0 0.0
        %1219 = vmatpush.msra.mxu0 0.0
        %1220 = vmatpush.msra.mxu0 0.0
        %1221 = vmatpush.msra.mxu0 0.0
        %1222 = vmatpush.msra.mxu0 0.0
        %1223 = vmatpush.msra.mxu0 0.0
        %1224 = vmatpush.msra.mxu0 0.0
        %1225 = vmatpush.msra.mxu0 0.0
        %1226 = vmatpush.msra.mxu0 0.0
        %1227 = vmatpush.msra.mxu0 0.0
        %1228 = vmatpush.msra.mxu0 0.0
        %1229 = vmatpush.msra.mxu0 0.0
        %1230 = vmatpush.msra.mxu0 %v1208
        %1231 = vmatmul.f32.gmra.mxu0 %v1213
        %v1232 = vpop.f32.mrf.mxu0
        %v1233 = vadd.f32 0.0, %v1232
        %1234 = vdwg.mxu0
        %v1236 = vsel %vm959, %v1160, 0
        %1238 = vmatpush.msra.mxu0 0.0
        %1239 = vmatpush.msra.mxu0 0.0
        %1240 = vmatpush.msra.mxu0 0.0
        %1241 = vmatpush.msra.mxu0 0.0
        %1242 = vmatpush.msra.mxu0 0.0
        %1243 = vmatpush.msra.mxu0 0.0
        %1244 = vmatpush.msra.mxu0 0.0
        %1245 = vmatpush.msra.mxu0 0.0
        %1246 = vmatpush.msra.mxu0 0.0
        %1247 = vmatpush.msra.mxu0 0.0
        %1248 = vmatpush.msra.mxu0 0.0
        %1249 = vmatpush.msra.mxu0 0.0
        %1250 = vmatpush.msra.mxu0 0.0
        %1251 = vmatpush.msra.mxu0 0.0
        %1252 = vmatpush.msra.mxu0 0.0
        %1253 = vmatpush.msra.mxu0 %v1209
        %1254 = vmatmul.f32.gmra.mxu0 %v1236
        %v1255 = vpop.f32.mrf.mxu0
        %v1256 = vadd.f32 0.0, %v1255
        %1257 = vdwg.mxu0
        %v1259 = vsel %vm959, %v1183, 0
        %1261 = vmatpush.msra.mxu0 0.0
        %1262 = vmatpush.msra.mxu0 0.0
        %1263 = vmatpush.msra.mxu0 0.0
        %1264 = vmatpush.msra.mxu0 0.0
        %1265 = vmatpush.msra.mxu0 0.0
        %1266 = vmatpush.msra.mxu0 0.0
        %1267 = vmatpush.msra.mxu0 0.0
        %1268 = vmatpush.msra.mxu0 0.0
        %1269 = vmatpush.msra.mxu0 0.0
        %1270 = vmatpush.msra.mxu0 0.0
        %1271 = vmatpush.msra.mxu0 0.0
        %1272 = vmatpush.msra.mxu0 0.0
        %1273 = vmatpush.msra.mxu0 0.0
        %1274 = vmatpush.msra.mxu0 0.0
        %1275 = vmatpush.msra.mxu0 0.0
        %1276 = vmatpush.msra.mxu0 %v1210
        %1277 = vmatmul.f32.gmra.mxu0 %v1259
        %v1278 = vpop.f32.mrf.mxu0
        %v1279 = vadd.f32 0.0, %v1278
        %1280 = vdwg.mxu0
        %v1282 = vsel %vm959, %v1206, 0
        %1284 = vmatpush.msra.mxu0 0.0
        %1285 = vmatpush.msra.mxu0 0.0
        %1286 = vmatpush.msra.mxu0 0.0
        %1287 = vmatpush.msra.mxu0 0.0
        %1288 = vmatpush.msra.mxu0 0.0
        %1289 = vmatpush.msra.mxu0 0.0
        %1290 = vmatpush.msra.mxu0 0.0
        %1291 = vmatpush.msra.mxu0 0.0
        %1292 = vmatpush.msra.mxu0 0.0
        %1293 = vmatpush.msra.mxu0 0.0
        %1294 = vmatpush.msra.mxu0 0.0
        %1295 = vmatpush.msra.mxu0 0.0
        %1296 = vmatpush.msra.mxu0 0.0
        %1297 = vmatpush.msra.mxu0 0.0
        %1298 = vmatpush.msra.mxu0 0.0
        %1299 = vmatpush.msra.mxu0 %v1211
        %1300 = vmatmul.f32.gmra.mxu0 %v1282
        %v1301 = vpop.f32.mrf.mxu0
        %v1302 = vadd.f32 0.0, %v1301
        %1303 = vdwg.mxu0
        %v1304 = vsel %vm651, %v1233, 0.0
        %v1305 = vsel %vm651, %v1256, 0.0
        %v1306 = vadd.f32 %v1304, %v1305
        %v1307 = vsel %vm651, %v1279, 0.0
        %v1308 = vadd.f32 %v1306, %v1307
        %v1309 = vsel %vm651, %v1302, 0.0
        %v1310 = vadd.f32 %v1308, %v1309
        %v1311 = vld [vmem:[%s9] sm:$0x1]
        %v1313 = vperm.slane %v1311, 0
        %v1315 = vadd.f32 %v1310, %v1313
        %v1316 = vadd.f32 %v615, %v1315
        %v1317 = vld [vmem:[%s10] sm:$0x1]
        %v1318 = vld [vmem:[%s11] sm:$0x1]
        %v1319 = vsel %vm651, %v1316, 0.0
        %1320 = vadd.xlane.f32.xlu0 %v1319
        %v1321 = vpop.xlane.xlu0 %1320
        %v1322 = vrcp.pop 32.0
        %v1323 = vmul.f32 32.0, %v1322
        %v1324 = vsub.f32 1.0, %v1323
        %v1325 = vmul.f32 %v1322, %v1324
        %v1326 = vadd.f32 %v1322, %v1325
        %vm1327 = vweird.f32 %v1322
        %v1328 = vsel %vm1327, %v1322, %v1326
        %v1329 = vmul.f32 %v1321, %v1328
        %v1330 = vsub.f32 %v1316, %v1329
        %v1331 = vmul.f32 %v1330, %v1330
        %v1332 = vsel %vm651, %v1331, 0.0
        %1333 = vadd.xlane.f32.xlu0 %v1332
        %v1334 = vpop.xlane.xlu0 %1333
        %v1335 = vmul.f32 %v1334, %v1328
        %v1336 = vadd.f32 %v1335, 1e-05
        %v1337 = vrsqrt.pop %v1336
        %v1338 = vmul.f32 %v1337, %v1336
        %v1339 = vmul.f32 %v1338, %v1337
        %v1340 = vmul.f32 0.5, %v1339
        %v1341 = vsub.f32 1.5, %v1340
        %v1342 = vmul.f32 %v1337, %v1341
        %vm1343 = vweird.f32 %v1336
        %vm1344 = vweird.f32 %v1337
        %vm1345 = vmor %vm1343, %vm1344
        %v1346 = vsel %vm1345, %v1337, %v1342
        %v1347 = vmul.f32 %v1330, %v1346
        %v1349 = vperm.slane %v1317, 0
        %v1351 = vmul.f32 %v1347, %v1349
        %v1353 = vperm.slane %v1318, 0
        %v1355 = vadd.f32 %v1351, %v1353
        %v1356 = vld [vmem:[%s12] sm:$0xff]
        %v1357 = vld [vmem:[%s12 + $0x8] sm:$0xff]
        %v1358 = vld [vmem:[%s12 + $0x10] sm:$0xff]
        %v1359 = vld [vmem:[%s12 + $0x18] sm:$0xff]
        %v1360 = vld [vmem:[%s12 + $0x20] sm:$0xff]
        %v1361 = vld [vmem:[%s12 + $0x28] sm:$0xff]
        %v1362 = vld [vmem:[%s12 + $0x30] sm:$0xff]
        %v1363 = vld [vmem:[%s12 + $0x38] sm:$0xff]
        %v1364 = vld [vmem:[%s12 + $0x40] sm:$0xff]
        %v1365 = vld [vmem:[%s12 + $0x48] sm:$0xff]
        %v1366 = vld [vmem:[%s12 + $0x50] sm:$0xff]
        %v1367 = vld [vmem:[%s12 + $0x58] sm:$0xff]
        %v1368 = vld [vmem:[%s12 + $0x60] sm:$0xff]
        %v1369 = vld [vmem:[%s12 + $0x68] sm:$0xff]
        %v1370 = vld [vmem:[%s12 + $0x70] sm:$0xff]
        %v1371 = vld [vmem:[%s12 + $0x78] sm:$0xff]
        %v1373 = vsel %vm651, %v1355, 0
        %1375 = vmatpush.msra.mxu0 0.0
        %1376 = vmatpush.msra.mxu0 0.0
        %1377 = vmatpush.msra.mxu0 0.0
        %1378 = vmatpush.msra.mxu0 0.0
        %1379 = vmatpush.msra.mxu0 0.0
        %1380 = vmatpush.msra.mxu0 0.0
        %1381 = vmatpush.msra.mxu0 0.0
        %1382 = vmatpush.msra.mxu0 0.0
        %1383 = vmatpush.msra.mxu0 0.0
        %1384 = vmatpush.msra.mxu0 0.0
        %1385 = vmatpush.msra.mxu0 0.0
        %1386 = vmatpush.msra.mxu0 0.0
        %1387 = vmatpush.msra.mxu0 %v1368
        %1388 = vmatpush.msra.mxu0 %v1364
        %1389 = vmatpush.msra.mxu0 %v1360
        %1390 = vmatpush.msra.mxu0 %v1356
        %1391 = vmatmul.f32.gmra.mxu0 %v1373
        %v1392 = vpop.f32.mrf.mxu0
        %v1393 = vadd.f32 0.0, %v1392
        %1394 = vdwg.mxu0
        %1395 = vmatpush.msra.mxu0 0.0
        %1396 = vmatpush.msra.mxu0 0.0
        %1397 = vmatpush.msra.mxu0 0.0
        %1398 = vmatpush.msra.mxu0 0.0
        %1399 = vmatpush.msra.mxu0 0.0
        %1400 = vmatpush.msra.mxu0 0.0
        %1401 = vmatpush.msra.mxu0 0.0
        %1402 = vmatpush.msra.mxu0 0.0
        %1403 = vmatpush.msra.mxu0 0.0
        %1404 = vmatpush.msra.mxu0 0.0
        %1405 = vmatpush.msra.mxu0 0.0
        %1406 = vmatpush.msra.mxu0 0.0
        %1407 = vmatpush.msra.mxu0 %v1369
        %1408 = vmatpush.msra.mxu0 %v1365
        %1409 = vmatpush.msra.mxu0 %v1361
        %1410 = vmatpush.msra.mxu0 %v1357
        %1411 = vmatmul.f32.gmra.mxu0 %v1373
        %v1412 = vpop.f32.mrf.mxu0
        %v1413 = vadd.f32 0.0, %v1412
        %1414 = vdwg.mxu0
        %1415 = vmatpush.msra.mxu0 0.0
        %1416 = vmatpush.msra.mxu0 0.0
        %1417 = vmatpush.msra.mxu0 0.0
        %1418 = vmatpush.msra.mxu0 0.0
        %1419 = vmatpush.msra.mxu0 0.0
        %1420 = vmatpush.msra.mxu0 0.0
        %1421 = vmatpush.msra.mxu0 0.0
        %1422 = vmatpush.msra.mxu0 0.0
        %1423 = vmatpush.msra.mxu0 0.0
        %1424 = vmatpush.msra.mxu0 0.0
        %1425 = vmatpush.msra.mxu0 0.0
        %1426 = vmatpush.msra.mxu0 0.0
        %1427 = vmatpush.msra.mxu0 %v1370
        %1428 = vmatpush.msra.mxu0 %v1366
        %1429 = vmatpush.msra.mxu0 %v1362
        %1430 = vmatpush.msra.mxu0 %v1358
        %1431 = vmatmul.f32.gmra.mxu0 %v1373
        %v1432 = vpop.f32.mrf.mxu0
        %v1433 = vadd.f32 0.0, %v1432
        %1434 = vdwg.mxu0
        %1435 = vmatpush.msra.mxu0 0.0
        %1436 = vmatpush.msra.mxu0 0.0
        %1437 = vmatpush.msra.mxu0 0.0
        %1438 = vmatpush.msra.mxu0 0.0
        %1439 = vmatpush.msra.mxu0 0.0
        %1440 = vmatpush.msra.mxu0 0.0
        %1441 = vmatpush.msra.mxu0 0.0
        %1442 = vmatpush.msra.mxu0 0.0
        %1443 = vmatpush.msra.mxu0 0.0
        %1444 = vmatpush.msra.mxu0 0.0
        %1445 = vmatpush.msra.mxu0 0.0
        %1446 = vmatpush.msra.mxu0 0.0
        %1447 = vmatpush.msra.mxu0 %v1371
        %1448 = vmatpush.msra.mxu0 %v1367
        %1449 = vmatpush.msra.mxu0 %v1363
        %1450 = vmatpush.msra.mxu0 %v1359
        %1451 = vmatmul.f32.gmra.mxu0 %v1373
        %v1452 = vpop.f32.mrf.mxu0
        %v1453 = vadd.f32 0.0, %v1452
        %1454 = vdwg.mxu0
        %v1455 = vld [vmem:[%s13] sm:$0xff]
        %v1456 = vld [vmem:[%s13 + $0x8] sm:$0xff]
        %v1457 = vld [vmem:[%s13 + $0x10] sm:$0xff]
        %v1458 = vld [vmem:[%s13 + $0x18] sm:$0xff]
        %v1459 = vmul.f32 %v1393, %v1455
        %v1460 = vmul.f32 %v1413, %v1456
        %v1461 = vmul.f32 %v1433, %v1457
        %v1462 = vmul.f32 %v1453, %v1458
        %v1463 = vld [vmem:[%s14] sm:$0xff]
        %v1464 = vld [vmem:[%s14 + $0x8] sm:$0xff]
        %v1465 = vld [vmem:[%s14 + $0x10] sm:$0xff]
        %v1466 = vld [vmem:[%s14 + $0x18] sm:$0xff]
        %v1467 = vadd.f32 %v1459, %v1463
        %v1468 = vadd.f32 %v1460, %v1464
        %v1469 = vadd.f32 %v1461, %v1465
        %v1470 = vadd.f32 %v1462, %v1466
        %v1471 = vld [vmem:[%s15] sm:$0xff]
        %v1472 = vld [vmem:[%s15 + $0x8] sm:$0xff]
        %v1473 = vld [vmem:[%s15 + $0x10] sm:$0xff]
        %v1474 = vld [vmem:[%s15 + $0x18] sm:$0xff]
        %v1475 = vld [vmem:[%s15 + $0x20] sm:$0xff]
        %v1476 = vld [vmem:[%s15 + $0x28] sm:$0xff]
        %v1477 = vld [vmem:[%s15 + $0x30] sm:$0xff]
        %v1478 = vld [vmem:[%s15 + $0x38] sm:$0xff]
        %v1479 = vld [vmem:[%s15 + $0x40] sm:$0xff]
        %v1480 = vld [vmem:[%s15 + $0x48] sm:$0xff]
        %v1481 = vld [vmem:[%s15 + $0x50] sm:$0xff]
        %v1482 = vld [vmem:[%s15 + $0x58] sm:$0xff]
        %v1483 = vld [vmem:[%s15 + $0x60] sm:$0xff]
        %v1484 = vld [vmem:[%s15 + $0x68] sm:$0xff]
        %v1485 = vld [vmem:[%s15 + $0x70] sm:$0xff]
        %v1486 = vld [vmem:[%s15 + $0x78] sm:$0xff]
        %v1487 = vld [vmem:[%s15 + $0x80] sm:$0xff]
        %v1488 = vld [vmem:[%s15 + $0x88] sm:$0xff]
        %v1489 = vld [vmem:[%s15 + $0x90] sm:$0xff]
        %v1490 = vld [vmem:[%s15 + $0x98] sm:$0xff]
        %v1491 = vld [vmem:[%s15 + $0xa0] sm:$0xff]
        %v1492 = vld [vmem:[%s15 + $0xa8] sm:$0xff]
        %v1493 = vld [vmem:[%s15 + $0xb0] sm:$0xff]
        %v1494 = vld [vmem:[%s15 + $0xb8] sm:$0xff]
        %v1495 = vld [vmem:[%s15 + $0xc0] sm:$0xff]
        %v1496 = vld [vmem:[%s15 + $0xc8] sm:$0xff]
        %v1497 = vld [vmem:[%s15 + $0xd0] sm:$0xff]
        %v1498 = vld [vmem:[%s15 + $0xd8] sm:$0xff]
        %v1499 = vld [vmem:[%s15 + $0xe0] sm:$0xff]
        %v1500 = vld [vmem:[%s15 + $0xe8] sm:$0xff]
        %v1501 = vld [vmem:[%s15 + $0xf0] sm:$0xff]
        %v1502 = vld [vmem:[%s15 + $0xf8] sm:$0xff]
        %v1503 = vld [vmem:[%s15 + $0x100] sm:$0xff]
        %v1504 = vld [vmem:[%s15 + $0x108] sm:$0xff]
        %v1505 = vld [vmem:[%s15 + $0x110] sm:$0xff]
        %v1506 = vld [vmem:[%s15 + $0x118] sm:$0xff]
        %v1507 = vld [vmem:[%s15 + $0x120] sm:$0xff]
        %v1508 = vld [vmem:[%s15 + $0x128] sm:$0xff]
        %v1509 = vld [vmem:[%s15 + $0x130] sm:$0xff]
        %v1510 = vld [vmem:[%s15 + $0x138] sm:$0xff]
        %v1511 = vld [vmem:[%s15 + $0x140] sm:$0xff]
        %v1512 = vld [vmem:[%s15 + $0x148] sm:$0xff]
        %v1513 = vld [vmem:[%s15 + $0x150] sm:$0xff]
        %v1514 = vld [vmem:[%s15 + $0x158] sm:$0xff]
        %v1515 = vld [vmem:[%s15 + $0x160] sm:$0xff]
        %v1516 = vld [vmem:[%s15 + $0x168] sm:$0xff]
        %v1517 = vld [vmem:[%s15 + $0x170] sm:$0xff]
        %v1518 = vld [vmem:[%s15 + $0x178] sm:$0xff]
        %v1519 = vld [vmem:[%s15 + $0x180] sm:$0xff]
        %v1520 = vld [vmem:[%s15 + $0x188] sm:$0xff]
        %v1521 = vld [vmem:[%s15 + $0x190] sm:$0xff]
        %v1522 = vld [vmem:[%s15 + $0x198] sm:$0xff]
        %v1523 = vld [vmem:[%s15 + $0x1a0] sm:$0xff]
        %v1524 = vld [vmem:[%s15 + $0x1a8] sm:$0xff]
        %v1525 = vld [vmem:[%s15 + $0x1b0] sm:$0xff]
        %v1526 = vld [vmem:[%s15 + $0x1b8] sm:$0xff]
        %v1527 = vld [vmem:[%s15 + $0x1c0] sm:$0xff]
        %v1528 = vld [vmem:[%s15 + $0x1c8] sm:$0xff]
        %v1529 = vld [vmem:[%s15 + $0x1d0] sm:$0xff]
        %v1530 = vld [vmem:[%s15 + $0x1d8] sm:$0xff]
        %v1531 = vld [vmem:[%s15 + $0x1e0] sm:$0xff]
        %v1532 = vld [vmem:[%s15 + $0x1e8] sm:$0xff]
        %v1533 = vld [vmem:[%s15 + $0x1f0] sm:$0xff]
        %v1534 = vld [vmem:[%s15 + $0x1f8] sm:$0xff]
        %v1535 = vld [vmem:[%s16] sm:$0xff]
        %1536 = vmatpush.msra.mxu0 %v1486
        %1537 = vmatpush.msra.mxu0 %v1485
        %1538 = vmatpush.msra.mxu0 %v1484
        %1539 = vmatpush.msra.mxu0 %v1483
        %1540 = vmatpush.msra.mxu0 %v1482
        %1541 = vmatpush.msra.mxu0 %v1481
        %1542 = vmatpush.msra.mxu0 %v1480
        %1543 = vmatpush.msra.mxu0 %v1479
        %1544 = vmatpush.msra.mxu0 %v1478
        %1545 = vmatpush.msra.mxu0 %v1477
        %1546 = vmatpush.msra.mxu0 %v1476
        %1547 = vmatpush.msra.mxu0 %v1475
        %1548 = vmatpush.msra.mxu0 %v1474
        %1549 = vmatpush.msra.mxu0 %v1473
        %1550 = vmatpush.msra.mxu0 %v1472
        %1551 = vmatpush.msra.mxu0 %v1471
        %1552 = vmatmul.f32.gmra.mxu0 %v1467
        %v1553 = vpop.f32.mrf.mxu0
        %v1554 = vadd.f32 %v1535, %v1553
        %1555 = vdwg.mxu0
        %1556 = vmatpush.msra.mxu0 %v1502
        %1557 = vmatpush.msra.mxu0 %v1501
        %1558 = vmatpush.msra.mxu0 %v1500
        %1559 = vmatpush.msra.mxu0 %v1499
        %1560 = vmatpush.msra.mxu0 %v1498
        %1561 = vmatpush.msra.mxu0 %v1497
        %1562 = vmatpush.msra.mxu0 %v1496
        %1563 = vmatpush.msra.mxu0 %v1495
        %1564 = vmatpush.msra.mxu0 %v1494
        %1565 = vmatpush.msra.mxu0 %v1493
        %1566 = vmatpush.msra.mxu0 %v1492
        %1567 = vmatpush.msra.mxu0 %v1491
        %1568 = vmatpush.msra.mxu0 %v1490
        %1569 = vmatpush.msra.mxu0 %v1489
        %1570 = vmatpush.msra.mxu0 %v1488
        %1571 = vmatpush.msra.mxu0 %v1487
        %1572 = vmatmul.f32.gmra.mxu0 %v1468
        %v1573 = vpop.f32.mrf.mxu0
        %v1574 = vadd.f32 %v1554, %v1573
        %1575 = vdwg.mxu0
        %1576 = vmatpush.msra.mxu0 %v1518
        %1577 = vmatpush.msra.mxu0 %v1517
        %1578 = vmatpush.msra.mxu0 %v1516
        %1579 = vmatpush.msra.mxu0 %v1515
        %1580 = vmatpush.msra.mxu0 %v1514
        %1581 = vmatpush.msra.mxu0 %v1513
        %1582 = vmatpush.msra.mxu0 %v1512
        %1583 = vmatpush.msra.mxu0 %v1511
        %1584 = vmatpush.msra.mxu0 %v1510
        %1585 = vmatpush.msra.mxu0 %v1509
        %1586 = vmatpush.msra.mxu0 %v1508
        %1587 = vmatpush.msra.mxu0 %v1507
        %1588 = vmatpush.msra.mxu0 %v1506
        %1589 = vmatpush.msra.mxu0 %v1505
        %1590 = vmatpush.msra.mxu0 %v1504
        %1591 = vmatpush.msra.mxu0 %v1503
        %1592 = vmatmul.f32.gmra.mxu0 %v1469
        %v1593 = vpop.f32.mrf.mxu0
        %v1594 = vadd.f32 %v1574, %v1593
        %1595 = vdwg.mxu0
        %1596 = vmatpush.msra.mxu0 %v1534
        %1597 = vmatpush.msra.mxu0 %v1533
        %1598 = vmatpush.msra.mxu0 %v1532
        %1599 = vmatpush.msra.mxu0 %v1531
        %1600 = vmatpush.msra.mxu0 %v1530
        %1601 = vmatpush.msra.mxu0 %v1529
        %1602 = vmatpush.msra.mxu0 %v1528
        %1603 = vmatpush.msra.mxu0 %v1527
        %1604 = vmatpush.msra.mxu0 %v1526
        %1605 = vmatpush.msra.mxu0 %v1525
        %1606 = vmatpush.msra.mxu0 %v1524
        %1607 = vmatpush.msra.mxu0 %v1523
        %1608 = vmatpush.msra.mxu0 %v1522
        %1609 = vmatpush.msra.mxu0 %v1521
        %1610 = vmatpush.msra.mxu0 %v1520
        %1611 = vmatpush.msra.mxu0 %v1519
        %1612 = vmatmul.f32.gmra.mxu0 %v1470
        %v1613 = vpop.f32.mrf.mxu0
        %v1614 = vadd.f32 %v1594, %v1613
        %1615 = vdwg.mxu0
        %v1616 = vadd.f32 %v1355, %v1614
        %v1617 = vld [vmem:[%s17] sm:$0x1]
        %v1618 = vld [vmem:[%s18] sm:$0x1]
        %v1619 = vsel %vm651, %v1616, 0.0
        %1620 = vadd.xlane.f32.xlu0 %v1619
        %v1621 = vpop.xlane.xlu0 %1620
        %v1622 = vmul.f32 %v1621, %v1328
        %v1623 = vsub.f32 %v1616, %v1622
        %v1624 = vmul.f32 %v1623, %v1623
        %v1625 = vsel %vm651, %v1624, 0.0
        %1626 = vadd.xlane.f32.xlu0 %v1625
        %v1627 = vpop.xlane.xlu0 %1626
        %v1628 = vmul.f32 %v1627, %v1328
        %v1629 = vadd.f32 %v1628, 1e-05
        %v1630 = vrsqrt.pop %v1629
        %v1631 = vmul.f32 %v1630, %v1629
        %v1632 = vmul.f32 %v1631, %v1630
        %v1633 = vmul.f32 0.5, %v1632
        %v1634 = vsub.f32 1.5, %v1633
        %v1635 = vmul.f32 %v1630, %v1634
        %vm1636 = vweird.f32 %v1629
        %vm1637 = vweird.f32 %v1630
        %vm1638 = vmor %vm1636, %vm1637
        %v1639 = vsel %vm1638, %v1630, %v1635
        %v1640 = vmul.f32 %v1623, %v1639
        %v1642 = vperm.slane %v1617, 0
        %v1644 = vmul.f32 %v1640, %v1642
        %v1646 = vperm.slane %v1618, 0
        %v1648 = vadd.f32 %v1644, %v1646
        %1649 = vst.msk [vmem:[%s606] sm:$0xff] %vm651, %v1648
        %s1650 = sand.u32 %s450, 1
        %s1651 = scalar_lea.sflag [#allocation3], %s1650
        %s1652 = sand.u32 %s450, 1
        %s1653 = smul.addr %s1652, 8
        %s1654 = scalar_lea.vmem [#allocation2], %s1653
        // Predicated region
        $region97: #{tpu_custom_call.1} parent=95 // pred_check
          %p1655 = pneg %p460
        $region98: #{tpu_custom_call.1} parent=95 // pred_check_branch
          %1657 = sbr.rel (%p1655) target = $region100
        $region99: #{tpu_custom_call.1} parent=95 // pred_region
          %1659 = vsyncadd %s1651, 0
          %s1660 = smul.addr %s33, 8
          %s1661 = scalar_lea.hbm %s19, %s1660
          %s1663 = sshll.u32 %s1654, 4
          %s1664 = int_to_ptr.vmem [resolvable:$true] %s1663
          %s1665 = sshll.u32 %s1661, 4
          %s1666 = int_to_ptr.hbm [resolvable:$true] %s1665
          %1668 = dma.vmem_to_hbm [thread:$0]  %s1664, 128, %s1666, %s1651
        $region100: #{tpu_custom_call.1} parent=95 // pred_fallthru
          _
      $region96: #{tpu_custom_call.1} parent=5 // pred_fallthru
        _
      %p1669 = scmp.le.s32.totalorder 2, %s28
      // Predicated region
      $region101: #{tpu_custom_call.1} parent=5 // pred_check
        %p1670 = pneg %p1669
      $region102: #{tpu_custom_call.1} parent=5 // pred_check_branch
        %1672 = sbr.rel (%p1670) target = $region104
      $region103: #{tpu_custom_call.1} parent=5 // pred_region
        %s1673 = ssub.s32 %s28, 2
        // Predicated region
        $region105: #{tpu_custom_call.1} parent=103 // pred_check
          %p1674 = pneg %p466
        $region106: #{tpu_custom_call.1} parent=103 // pred_check_branch
          %1676 = sbr.rel (%p1674) target = $region108
        $region107: #{tpu_custom_call.1} parent=103 // pred_region
          %s1677 = sand.u32 %s451, 1
          %s1678 = scalar_lea.sflag [#allocation3], %s1677
          %s1679 = sand.u32 %s451, 1
          %s1680 = smul.addr %s1679, 8
          %s1681 = scalar_lea.vmem [#allocation2], %s1680
          %1683 = dma.done %s1678, 128
        $region108: #{tpu_custom_call.1} parent=103 // pred_fallthru
          _
      $region104: #{tpu_custom_call.1} parent=5 // pred_fallthru
        _
    $region6: #{tpu_custom_call.1} parent=1 // loop_footer
      %s32 = sadd.s32 1, %s28
    $region7: #{tpu_custom_call.1} parent=1 // loop_footer_branch
      %27 = sbr.rel target = $region3
    $region8: #{tpu_custom_call.1} parent=1 // loop_exit
      _
    %1684 = vsyncpa [#allocation3], 1
    %s1685 = scalar_lea.sflag [#allocation3], 1
    %1686 = vsyncpa %s1685, 1

</llo_original>
